<compile_context>
chip_gen: v6e
topology: v6e:2x2x1
jax: 0.10.0
libtpu: 0.0.40
codegen_flags: <defaults>
</compile_context>

<pallas_src>
import functools
import math

import jax
import jax.numpy as jnp
import numpy as np
from jax.experimental import pallas as pl
from jax.experimental.pallas import tpu as pltpu


def _layernorm(x, gamma, beta, eps=1e-5):
    mu = jnp.mean(x, axis=-1, keepdims=True)
    var = jnp.mean((x - mu) ** 2, axis=-1, keepdims=True)
    return (x - mu) * jax.lax.rsqrt(var + eps) * gamma + beta


def cross_attention_kernel(
    q_ref, k_ref, v_ref,
    wq_ref, bq_ref, wk_ref, bk_ref, wv_ref, bv_ref,
    wo_ref, bo_ref,
    g1_ref, be1_ref,
    w1_ref, b1_ref, w2_ref, b2_ref,
    g2_ref, be2_ref,
    o_ref,
    heads_ref,                      # VMEM scratch: (TB*Lq, E) bf16 head-output slab
    *, num_heads,
):
    TB, Lq, E = q_ref.shape
    _, Lk, _ = k_ref.shape
    H = num_heads
    Dh = E // H
    f32, bf16 = jnp.float32, jnp.bfloat16

    # Collapse batch x sequence so every matmul / LayerNorm sees M = TB*L rows.
    q_in = q_ref[...].reshape(TB * Lq, E)          # bf16 activation input
    k_in = k_ref[...].reshape(TB * Lk, E)
    v_in = v_ref[...].reshape(TB * Lk, E)
    q_res = q_in.astype(f32)                       # f32 residual (recomputed from bf16 input)

    # Input projections: bf16 operands on the MXU, f32 accumulation, then a SINGLE cast of
    # q/k/v back to bf16 (halves the live footprint across the whole unrolled head loop).
    # The 1/sqrt(Dh) attention scale is already folded into wq / bq by the wrapper.
    q3 = (jnp.dot(q_in, wq_ref[...], preferred_element_type=f32)
          + bq_ref[...]).astype(bf16).reshape(TB, Lq, E)
    k3 = (jnp.dot(k_in, wk_ref[...], preferred_element_type=f32)
          + bk_ref[...]).astype(bf16).reshape(TB, Lk, E)
    v3 = (jnp.dot(v_in, wv_ref[...], preferred_element_type=f32)
          + bv_ref[...]).astype(bf16).reshape(TB, Lk, E)

    # Per-head scaled-dot-product attention (batched over TB via 3-D einsums).
    # Each head's output goes into the bf16 slab at lane offset h*Dh; the output projection
    # is then ONE full-width K=E matmul (no half-empty Dh-deep matmuls, no VALU accumulate).
    for h in range(H):
        lo = h * Dh
        qh = q3[:, :, lo:lo + Dh]                  # (TB, Lq, Dh) bf16
        kh = k3[:, :, lo:lo + Dh]                  # (TB, Lk, Dh) bf16
        vh = v3[:, :, lo:lo + Dh]                  # (TB, Lk, Dh) bf16

        s = jnp.einsum("bqd,bkd->bqk", qh, kh, preferred_element_type=f32)
        s = s - jnp.max(s, axis=-1, keepdims=True)
        p = jnp.exp(s)
        p = p * pl.reciprocal(jnp.sum(p, axis=-1, keepdims=True), approx=True)

        oh = jnp.einsum("bqk,bkd->bqd", p.astype(bf16), vh, preferred_element_type=f32)
        heads_ref[:, lo:lo + Dh] = oh.reshape(TB * Lq, Dh).astype(bf16)

    attn = jnp.dot(heads_ref[...], wo_ref[...], preferred_element_type=f32) + bo_ref[...]

    # residual + LayerNorm (f32)
    x1 = _layernorm(attn + q_res, g1_ref[...], be1_ref[...])

    # Feed-forward: Linear -> Swish -> Linear, then residual + LayerNorm.
    h1 = jnp.dot(x1.astype(bf16), w1_ref[...], preferred_element_type=f32) + b1_ref[...]
    h1 = h1 * jax.nn.sigmoid(h1)                   # Swish in f32 (VPU/EUP)
    ff = jnp.dot(h1.astype(bf16), w2_ref[...], preferred_element_type=f32) + b2_ref[...]
    x2 = _layernorm(ff + x1, g2_ref[...], be2_ref[...])

    # NOTE: for production sizes keep E a multiple of 128 so this store is lane-dense.
    o_ref[...] = x2.reshape(TB, Lq, E).astype(o_ref.dtype)


def _prep_params(params, num_heads):
    """Fold the attention scale into wq/bq and cast matmul weights to bf16.

    Biases and LayerNorm params stay f32 (added to / used in f32 math).
    """
    E = params["wq"].shape[0]
    Dh = E // num_heads
    scale = 1.0 / math.sqrt(Dh)
    bf16, f32 = jnp.bfloat16, jnp.float32
    return [
        (params["wq"] * scale).astype(bf16), (params["bq"] * scale).astype(f32),
        params["wk"].astype(bf16), params["bk"].astype(f32),
        params["wv"].astype(bf16), params["bv"].astype(f32),
        params["wo"].astype(bf16), params["bo"].astype(f32),
        params["ln1_g"].astype(f32), params["ln1_b"].astype(f32),
        params["w1"].astype(bf16), params["b1"].astype(f32),
        params["w2"].astype(bf16), params["b2"].astype(f32),
        params["ln2_g"].astype(f32), params["ln2_b"].astype(f32),
    ]


def _vmem_limit_bytes():
    """64 MiB on 128-MiB-VMEM chips (v5e/v6e), 32 MiB on v7x (64 MiB physical)."""
    try:
        cap = int(pltpu.get_tpu_info().vmem_capacity_bytes)
    except Exception:              # conservative fallback if the query is unavailable
        cap = 64 << 20
    return min(64 << 20, max(32 << 20, cap // 2))


def _tile_act_bytes(tb, Lq, Lk, E, Hd, io_bytes):
    """Per-grid-step VMEM footprint of ALL resident activation intermediates."""
    mq, mk = tb * Lq, tb * Lk
    dma = 2 * (mq * E + 2 * mk * E + mq * E) * io_bytes   # in/out DMA tiles, double-buffered
    proj = (mq + 2 * mk) * E * (4 + 2)                    # f32 projections + bf16 copies
    scores = 2 * tb * Lq * Lk * 4                         # score + prob matrices (f32)
    heads = mq * E * 2                                    # bf16 head-output scratch
    attn = 2 * mq * E * 4                                 # attn accumulator + x1 (f32)
    ffn = mq * Hd * (4 + 2) + 2 * mq * E * 4              # hidden (f32+bf16) + ff/x2 (f32)
    return dma + proj + scores + heads + attn + ffn


def _pick_block_b(B, Lq, Lk, E, Hd, io_bytes, budget_bytes, target_rows=512):
    """Largest divisor of B whose resident intermediates fit the VMEM budget, capped at
    B // 2 so the grid always has >= 2 blocks (v7x's two TensorCores both get work),
    preferring TB*Lq >= target_rows so the matmul M dimension fills the MXU."""
    max_tb = max(1, B // 2)
    best = 1
    for tb in range(1, max_tb + 1):
        if B % tb:
            continue
        if _tile_act_bytes(tb, Lq, Lk, E, Hd, io_bytes) > budget_bytes:
            break
        best = tb
        if tb * Lq >= target_rows:
            break
    return best


def cross_attention_forward(Q, K, V, params, num_heads, block_b=None,
                            io_dtype=jnp.bfloat16):
    B, Lq, E = Q.shape
    _, Lk, _ = K.shape
    assert E % num_heads == 0

    weights = _prep_params(params, num_heads)
    Hd = params["w1"].shape[1]

    vmem_limit = _vmem_limit_bytes()
    io_bytes = jnp.dtype(io_dtype).itemsize
    if block_b is None:
        TB = _pick_block_b(B, Lq, Lk, E, Hd, io_bytes, budget_bytes=vmem_limit // 4)
    else:
        TB = block_b
    assert B % TB == 0

    # bf16 activation I/O halves HBM traffic; LayerNorm/softmax math stays f32 in-kernel.
    Qc, Kc, Vc = (x.astype(io_dtype) for x in (Q, K, V))

    def batch_spec(L):
        return pl.BlockSpec((TB, L, E), lambda b: (b, 0, 0))

    def full_spec(arr):
        nd = arr.ndim
        # Constant index_map => the pipeline never re-fetches these between grid steps.
        return pl.BlockSpec(arr.shape, lambda b, _nd=nd: (0,) * _nd)

    in_specs = ([batch_spec(Lq), batch_spec(Lk), batch_spec(Lk)]
                + [full_spec(w) for w in weights])

    kernel = functools.partial(cross_attention_kernel, num_heads=num_heads)

    return pl.pallas_call(
        kernel,
        out_shape=jax.ShapeDtypeStruct((B, Lq, E), io_dtype),
        grid=(B // TB,),
        in_specs=in_specs,
        out_specs=pl.BlockSpec((TB, Lq, E), lambda b: (b, 0, 0)),
        scratch_shapes=[pltpu.VMEM((TB * Lq, E), jnp.bfloat16)],   # head-output slab
        compiler_params=pltpu.CompilerParams(
            dimension_semantics=("parallel",),     # batch blocks are independent (v7x 2 TCs)
            vmem_limit_bytes=vmem_limit,           # capacity-derived (see _vmem_limit_bytes)
        ),
    )(Qc, Kc, Vc, *weights)


def reference_forward(Q, K, V, p, num_heads):
    """Pure-JAX f32 reference mirroring the PyTorch module semantics."""
    B, Lq, E = Q.shape
    Dh = E // num_heads
    scale = 1.0 / math.sqrt(Dh)

    def proj(x, w, b):
        return jnp.einsum("ble,ef->blf", x, w) + b

    q = proj(Q, p["wq"], p["bq"])
    k = proj(K, p["wk"], p["bk"])
    v = proj(V, p["wv"], p["bv"])

    def split(x):
        return x.reshape(B, -1, num_heads, Dh).transpose(0, 2, 1, 3)

    qh, kh, vh = split(q) * scale, split(k), split(v)
    s = jnp.einsum("bhqd,bhkd->bhqk", qh, kh)
    a = jax.nn.softmax(s, axis=-1)
    o = jnp.einsum("bhqk,bhkd->bhqd", a, vh)
    o = o.transpose(0, 2, 1, 3).reshape(B, -1, E)
    o = proj(o, p["wo"], p["bo"])

    def ln(x, g, b, eps=1e-5):
        mu = jnp.mean(x, axis=-1, keepdims=True)
        var = jnp.mean((x - mu) ** 2, axis=-1, keepdims=True)
        return (x - mu) / jnp.sqrt(var + eps) * g + b

    x1 = ln(o + Q, p["ln1_g"], p["ln1_b"])
    h1 = proj(x1, p["w1"], p["b1"])
    h1 = h1 * jax.nn.sigmoid(h1)
    ff = proj(h1, p["w2"], p["b2"])
    return ln(ff + x1, p["ln2_g"], p["ln2_b"])


def init_params(key, embed_dim, hidden_dim=128):
    E, Hd = embed_dim, hidden_dim
    ks = jax.random.split(key, 10)
    scale = 1.0 / math.sqrt(E)

    def w(k, shape, s):
        return jax.random.normal(k, shape, jnp.float32) * s

    return {
        # attention projections: stored as (in, out), biases as (1, out)
        "wq": w(ks[0], (E, E), scale), "bq": jnp.zeros((1, E), jnp.float32),
        "wk": w(ks[1], (E, E), scale), "bk": jnp.zeros((1, E), jnp.float32),
        "wv": w(ks[2], (E, E), scale), "bv": jnp.zeros((1, E), jnp.float32),
        "wo": w(ks[3], (E, E), scale), "bo": w(ks[4], (1, E), 0.02),
        "ln1_g": jnp.ones((1, E), jnp.float32),
        "ln1_b": jnp.zeros((1, E), jnp.float32),
        # feedforward
        "w1": w(ks[5], (E, Hd), scale), "b1": w(ks[6], (1, Hd), 0.02),
        "w2": w(ks[7], (Hd, E), 1.0 / math.sqrt(Hd)),
        "b2": w(ks[8], (1, E), 0.02),
        "ln2_g": jnp.ones((1, E), jnp.float32),
        "ln2_b": jnp.zeros((1, E), jnp.float32),
    }


if __name__ == "__main__":
    B, Lq, Lk, E, H = 2, 8, 8, 32, 4     # small shapes; E % H == 0

    key = jax.random.PRNGKey(0)
    kq, kk, kv, kp = jax.random.split(key, 4)
    Q = jax.random.normal(kq, (B, Lq, E), jnp.float32)
    K = jax.random.normal(kk, (B, Lk, E), jnp.float32)
    V = jax.random.normal(kv, (B, Lk, E), jnp.float32)
    params = init_params(kp, E, hidden_dim=128)

    out = cross_attention_forward(Q, K, V, params, num_heads=H)
    out = jax.block_until_ready(out)

    ref = jax.block_until_ready(reference_forward(Q, K, V, params, H))
    # bf16 activation I/O + bf16 MXU operands + approx reciprocal -> loosened tolerance
    # vs. the f32 reference.
    np.testing.assert_allclose(np.asarray(out.astype(jnp.float32)), np.asarray(ref),
                               rtol=6e-2, atol=6e-2)
    print("KERNEL_OK")
</pallas_src>

<mosaic_0001>
module attributes {stable_mosaic.version = 11 : i64} {
  func.func @cross_attention_kernel(%arg0: i32, %arg1: memref<1x8x32xbf16, #tpu.memory_space<vmem>>, %arg2: memref<1x8x32xbf16, #tpu.memory_space<vmem>>, %arg3: memref<1x8x32xbf16, #tpu.memory_space<vmem>>, %arg4: memref<32x32xbf16, #tpu.memory_space<vmem>>, %arg5: memref<1x32xf32, #tpu.memory_space<vmem>>, %arg6: memref<32x32xbf16, #tpu.memory_space<vmem>>, %arg7: memref<1x32xf32, #tpu.memory_space<vmem>>, %arg8: memref<32x32xbf16, #tpu.memory_space<vmem>>, %arg9: memref<1x32xf32, #tpu.memory_space<vmem>>, %arg10: memref<32x32xbf16, #tpu.memory_space<vmem>>, %arg11: memref<1x32xf32, #tpu.memory_space<vmem>>, %arg12: memref<1x32xf32, #tpu.memory_space<vmem>>, %arg13: memref<1x32xf32, #tpu.memory_space<vmem>>, %arg14: memref<32x128xbf16, #tpu.memory_space<vmem>>, %arg15: memref<1x128xf32, #tpu.memory_space<vmem>>, %arg16: memref<128x32xbf16, #tpu.memory_space<vmem>>, %arg17: memref<1x32xf32, #tpu.memory_space<vmem>>, %arg18: memref<1x32xf32, #tpu.memory_space<vmem>>, %arg19: memref<1x32xf32, #tpu.memory_space<vmem>>, %arg20: memref<1x8x32xbf16, #tpu.memory_space<vmem>>, %arg21: memref<8x32xbf16, #tpu.memory_space<vmem>>) attributes {dimension_semantics = [#tpu.dimension_semantics<parallel>], iteration_bounds = array<i64: 2>, scalar_prefetch = 0 : i64, scratch_operands = 1 : i64, tpu.core_type = #tpu.core_type<tc>, window_params = [{transform_indices = @transform_0, window_bounds = array<i64: 1, 8, 32>}, {transform_indices = @transform_1, window_bounds = array<i64: 1, 8, 32>}, {transform_indices = @transform_2, window_bounds = array<i64: 1, 8, 32>}, {pipeline_mode = #tpu.pipeline_mode<synchronous>, transform_indices = @transform_3, window_bounds = array<i64: 32, 32>}, {pipeline_mode = #tpu.pipeline_mode<synchronous>, transform_indices = @transform_4, window_bounds = array<i64: 1, 32>}, {pipeline_mode = #tpu.pipeline_mode<synchronous>, transform_indices = @transform_5, window_bounds = array<i64: 32, 32>}, {pipeline_mode = #tpu.pipeline_mode<synchronous>, transform_indices = @transform_6, window_bounds = array<i64: 1, 32>}, {pipeline_mode = #tpu.pipeline_mode<synchronous>, transform_indices = @transform_7, window_bounds = array<i64: 32, 32>}, {pipeline_mode = #tpu.pipeline_mode<synchronous>, transform_indices = @transform_8, window_bounds = array<i64: 1, 32>}, {pipeline_mode = #tpu.pipeline_mode<synchronous>, transform_indices = @transform_9, window_bounds = array<i64: 32, 32>}, {pipeline_mode = #tpu.pipeline_mode<synchronous>, transform_indices = @transform_10, window_bounds = array<i64: 1, 32>}, {pipeline_mode = #tpu.pipeline_mode<synchronous>, transform_indices = @transform_11, window_bounds = array<i64: 1, 32>}, {pipeline_mode = #tpu.pipeline_mode<synchronous>, transform_indices = @transform_12, window_bounds = array<i64: 1, 32>}, {pipeline_mode = #tpu.pipeline_mode<synchronous>, transform_indices = @transform_13, window_bounds = array<i64: 32, 128>}, {pipeline_mode = #tpu.pipeline_mode<synchronous>, transform_indices = @transform_14, window_bounds = array<i64: 1, 128>}, {pipeline_mode = #tpu.pipeline_mode<synchronous>, transform_indices = @transform_15, window_bounds = array<i64: 128, 32>}, {pipeline_mode = #tpu.pipeline_mode<synchronous>, transform_indices = @transform_16, window_bounds = array<i64: 1, 32>}, {pipeline_mode = #tpu.pipeline_mode<synchronous>, transform_indices = @transform_17, window_bounds = array<i64: 1, 32>}, {pipeline_mode = #tpu.pipeline_mode<synchronous>, transform_indices = @transform_18, window_bounds = array<i64: 1, 32>}, {transform_indices = @transform_19, window_bounds = array<i64: 1, 8, 32>}]} {
    %c0 = arith.constant 0 : index
    %c0_0 = arith.constant 0 : index
    %c0_1 = arith.constant 0 : index
    %0 = vector.load %arg1[%c0, %c0_0, %c0_1] : memref<1x8x32xbf16, #tpu.memory_space<vmem>>, vector<1x8x32xbf16>
    %1 = vector.shape_cast %0 : vector<1x8x32xbf16> to vector<8x32xbf16>
    %c0_2 = arith.constant 0 : index
    %c0_3 = arith.constant 0 : index
    %c0_4 = arith.constant 0 : index
    %2 = vector.load %arg2[%c0_2, %c0_3, %c0_4] : memref<1x8x32xbf16, #tpu.memory_space<vmem>>, vector<1x8x32xbf16>
    %3 = vector.shape_cast %2 : vector<1x8x32xbf16> to vector<8x32xbf16>
    %c0_5 = arith.constant 0 : index
    %c0_6 = arith.constant 0 : index
    %c0_7 = arith.constant 0 : index
    %4 = vector.load %arg3[%c0_5, %c0_6, %c0_7] : memref<1x8x32xbf16, #tpu.memory_space<vmem>>, vector<1x8x32xbf16>
    %5 = vector.shape_cast %4 : vector<1x8x32xbf16> to vector<8x32xbf16>
    %6 = arith.extf %1 : vector<8x32xbf16> to vector<8x32xf32>
    %c0_8 = arith.constant 0 : index
    %c0_9 = arith.constant 0 : index
    %7 = vector.load %arg4[%c0_8, %c0_9] : memref<32x32xbf16, #tpu.memory_space<vmem>>, vector<32x32xbf16>
    %cst = arith.constant dense<0.000000e+00> : vector<8x32xf32>
    %8 = tpu.matmul %1, %7, %cst {dimension_numbers = #tpu.dot_dimension_numbers<[1], [0], [0], [1], [0, 0, 1, 1], [], []>} : vector<8x32xbf16>, vector<32x32xbf16>, vector<8x32xf32> -> vector<8x32xf32>
    %c0_10 = arith.constant 0 : index
    %c0_11 = arith.constant 0 : index
    %9 = vector.load %arg5[%c0_10, %c0_11] : memref<1x32xf32, #tpu.memory_space<vmem>>, vector<1x32xf32>
    %10 = vector.broadcast %9 : vector<1x32xf32> to vector<8x32xf32>
    %11 = arith.addf %8, %10 : vector<8x32xf32>
    %12 = arith.truncf %11 : vector<8x32xf32> to vector<8x32xbf16>
    %13 = vector.shape_cast %12 : vector<8x32xbf16> to vector<1x8x32xbf16>
    %c0_12 = arith.constant 0 : index
    %c0_13 = arith.constant 0 : index
    %14 = vector.load %arg6[%c0_12, %c0_13] : memref<32x32xbf16, #tpu.memory_space<vmem>>, vector<32x32xbf16>
    %cst_14 = arith.constant dense<0.000000e+00> : vector<8x32xf32>
    %15 = tpu.matmul %3, %14, %cst_14 {dimension_numbers = #tpu.dot_dimension_numbers<[1], [0], [0], [1], [0, 0, 1, 1], [], []>} : vector<8x32xbf16>, vector<32x32xbf16>, vector<8x32xf32> -> vector<8x32xf32>
    %c0_15 = arith.constant 0 : index
    %c0_16 = arith.constant 0 : index
    %16 = vector.load %arg7[%c0_15, %c0_16] : memref<1x32xf32, #tpu.memory_space<vmem>>, vector<1x32xf32>
    %17 = vector.broadcast %16 : vector<1x32xf32> to vector<8x32xf32>
    %18 = arith.addf %15, %17 : vector<8x32xf32>
    %19 = arith.truncf %18 : vector<8x32xf32> to vector<8x32xbf16>
    %20 = vector.shape_cast %19 : vector<8x32xbf16> to vector<1x8x32xbf16>
    %c0_17 = arith.constant 0 : index
    %c0_18 = arith.constant 0 : index
    %21 = vector.load %arg8[%c0_17, %c0_18] : memref<32x32xbf16, #tpu.memory_space<vmem>>, vector<32x32xbf16>
    %cst_19 = arith.constant dense<0.000000e+00> : vector<8x32xf32>
    %22 = tpu.matmul %5, %21, %cst_19 {dimension_numbers = #tpu.dot_dimension_numbers<[1], [0], [0], [1], [0, 0, 1, 1], [], []>} : vector<8x32xbf16>, vector<32x32xbf16>, vector<8x32xf32> -> vector<8x32xf32>
    %c0_20 = arith.constant 0 : index
    %c0_21 = arith.constant 0 : index
    %23 = vector.load %arg9[%c0_20, %c0_21] : memref<1x32xf32, #tpu.memory_space<vmem>>, vector<1x32xf32>
    %24 = vector.broadcast %23 : vector<1x32xf32> to vector<8x32xf32>
    %25 = arith.addf %22, %24 : vector<8x32xf32>
    %26 = arith.truncf %25 : vector<8x32xf32> to vector<8x32xbf16>
    %27 = vector.shape_cast %26 : vector<8x32xbf16> to vector<1x8x32xbf16>
    %28 = vector.extract_strided_slice %13 {offsets = [0, 0, 0], sizes = [1, 8, 8], strides = [1, 1, 1]} : vector<1x8x32xbf16> to vector<1x8x8xbf16>
    %29 = vector.extract_strided_slice %20 {offsets = [0, 0, 0], sizes = [1, 8, 8], strides = [1, 1, 1]} : vector<1x8x32xbf16> to vector<1x8x8xbf16>
    %30 = vector.extract_strided_slice %27 {offsets = [0, 0, 0], sizes = [1, 8, 8], strides = [1, 1, 1]} : vector<1x8x32xbf16> to vector<1x8x8xbf16>
    "tpu.trace_start"() <{level = 10 : i32, message = "bqd,bkd->bqk"}> : () -> ()
    %cst_22 = arith.constant dense<0.000000e+00> : vector<1x8x8xf32>
    %31 = tpu.matmul %28, %29, %cst_22 {dimension_numbers = #tpu.dot_dimension_numbers<[2], [2], [1], [1], [0, 0, 0, 1, 1, 1], [0], [0]>} : vector<1x8x8xbf16>, vector<1x8x8xbf16>, vector<1x8x8xf32> -> vector<1x8x8xf32>
    "tpu.trace_stop"() : () -> ()
    %cst_23 = arith.constant dense<0xFF800000> : vector<1x8xf32>
    %32 = vector.multi_reduction <maximumf>, %31, %cst_23 [2] : vector<1x8x8xf32> to vector<1x8xf32>
    %33 = vector.shape_cast %32 : vector<1x8xf32> to vector<1x8x1xf32>
    %34 = vector.broadcast %33 : vector<1x8x1xf32> to vector<1x8x8xf32>
    %35 = arith.subf %31, %34 : vector<1x8x8xf32>
    %36 = math.exp %35 : vector<1x8x8xf32>
    %cst_24 = arith.constant dense<0.000000e+00> : vector<1x8xf32>
    %37 = vector.multi_reduction <add>, %36, %cst_24 [2] : vector<1x8x8xf32> to vector<1x8xf32>
    %38 = vector.shape_cast %37 : vector<1x8xf32> to vector<1x8x1xf32>
    %39 = tpu.reciprocal %38 {approx = true} : vector<1x8x1xf32> -> vector<1x8x1xf32>
    %40 = vector.broadcast %39 : vector<1x8x1xf32> to vector<1x8x8xf32>
    %41 = arith.mulf %36, %40 : vector<1x8x8xf32>
    %42 = arith.truncf %41 : vector<1x8x8xf32> to vector<1x8x8xbf16>
    "tpu.trace_start"() <{level = 10 : i32, message = "bqk,bkd->bqd"}> : () -> ()
    %cst_25 = arith.constant dense<0.000000e+00> : vector<1x8x8xf32>
    %43 = tpu.matmul %42, %30, %cst_25 {dimension_numbers = #tpu.dot_dimension_numbers<[2], [1], [1], [2], [0, 0, 0, 1, 1, 2], [0], [0]>} : vector<1x8x8xbf16>, vector<1x8x8xbf16>, vector<1x8x8xf32> -> vector<1x8x8xf32>
    "tpu.trace_stop"() : () -> ()
    %44 = vector.shape_cast %43 : vector<1x8x8xf32> to vector<8x8xf32>
    %45 = arith.truncf %44 : vector<8x8xf32> to vector<8x8xbf16>
    %c0_26 = arith.constant 0 : index
    %c0_27 = arith.constant 0 : index
    %46 = vector.load %arg21[%c0_26, %c0_27] : memref<8x32xbf16, #tpu.memory_space<vmem>>, vector<8x8xbf16>
    tpu.vector_store %arg21[%c0_26, %c0_27], %45 {strides = array<i32>} : memref<8x32xbf16, #tpu.memory_space<vmem>>, vector<8x8xbf16>,
    %47 = vector.extract_strided_slice %13 {offsets = [0, 0, 8], sizes = [1, 8, 8], strides = [1, 1, 1]} : vector<1x8x32xbf16> to vector<1x8x8xbf16>
    %48 = vector.extract_strided_slice %20 {offsets = [0, 0, 8], sizes = [1, 8, 8], strides = [1, 1, 1]} : vector<1x8x32xbf16> to vector<1x8x8xbf16>
    %49 = vector.extract_strided_slice %27 {offsets = [0, 0, 8], sizes = [1, 8, 8], strides = [1, 1, 1]} : vector<1x8x32xbf16> to vector<1x8x8xbf16>
    "tpu.trace_start"() <{level = 10 : i32, message = "bqd,bkd->bqk"}> : () -> ()
    %cst_28 = arith.constant dense<0.000000e+00> : vector<1x8x8xf32>
    %50 = tpu.matmul %47, %48, %cst_28 {dimension_numbers = #tpu.dot_dimension_numbers<[2], [2], [1], [1], [0, 0, 0, 1, 1, 1], [0], [0]>} : vector<1x8x8xbf16>, vector<1x8x8xbf16>, vector<1x8x8xf32> -> vector<1x8x8xf32>
    "tpu.trace_stop"() : () -> ()
    %cst_29 = arith.constant dense<0xFF800000> : vector<1x8xf32>
    %51 = vector.multi_reduction <maximumf>, %50, %cst_29 [2] : vector<1x8x8xf32> to vector<1x8xf32>
    %52 = vector.shape_cast %51 : vector<1x8xf32> to vector<1x8x1xf32>
    %53 = vector.broadcast %52 : vector<1x8x1xf32> to vector<1x8x8xf32>
    %54 = arith.subf %50, %53 : vector<1x8x8xf32>
    %55 = math.exp %54 : vector<1x8x8xf32>
    %cst_30 = arith.constant dense<0.000000e+00> : vector<1x8xf32>
    %56 = vector.multi_reduction <add>, %55, %cst_30 [2] : vector<1x8x8xf32> to vector<1x8xf32>
    %57 = vector.shape_cast %56 : vector<1x8xf32> to vector<1x8x1xf32>
    %58 = tpu.reciprocal %57 {approx = true} : vector<1x8x1xf32> -> vector<1x8x1xf32>
    %59 = vector.broadcast %58 : vector<1x8x1xf32> to vector<1x8x8xf32>
    %60 = arith.mulf %55, %59 : vector<1x8x8xf32>
    %61 = arith.truncf %60 : vector<1x8x8xf32> to vector<1x8x8xbf16>
    "tpu.trace_start"() <{level = 10 : i32, message = "bqk,bkd->bqd"}> : () -> ()
    %cst_31 = arith.constant dense<0.000000e+00> : vector<1x8x8xf32>
    %62 = tpu.matmul %61, %49, %cst_31 {dimension_numbers = #tpu.dot_dimension_numbers<[2], [1], [1], [2], [0, 0, 0, 1, 1, 2], [0], [0]>} : vector<1x8x8xbf16>, vector<1x8x8xbf16>, vector<1x8x8xf32> -> vector<1x8x8xf32>
    "tpu.trace_stop"() : () -> ()
    %63 = vector.shape_cast %62 : vector<1x8x8xf32> to vector<8x8xf32>
    %64 = arith.truncf %63 : vector<8x8xf32> to vector<8x8xbf16>
    %c0_32 = arith.constant 0 : index
    %c8 = arith.constant 8 : index
    %65 = vector.load %arg21[%c0_32, %c8] : memref<8x32xbf16, #tpu.memory_space<vmem>>, vector<8x8xbf16>
    tpu.vector_store %arg21[%c0_32, %c8], %64 {strides = array<i32>} : memref<8x32xbf16, #tpu.memory_space<vmem>>, vector<8x8xbf16>,
    %66 = vector.extract_strided_slice %13 {offsets = [0, 0, 16], sizes = [1, 8, 8], strides = [1, 1, 1]} : vector<1x8x32xbf16> to vector<1x8x8xbf16>
    %67 = vector.extract_strided_slice %20 {offsets = [0, 0, 16], sizes = [1, 8, 8], strides = [1, 1, 1]} : vector<1x8x32xbf16> to vector<1x8x8xbf16>
    %68 = vector.extract_strided_slice %27 {offsets = [0, 0, 16], sizes = [1, 8, 8], strides = [1, 1, 1]} : vector<1x8x32xbf16> to vector<1x8x8xbf16>
    "tpu.trace_start"() <{level = 10 : i32, message = "bqd,bkd->bqk"}> : () -> ()
    %cst_33 = arith.constant dense<0.000000e+00> : vector<1x8x8xf32>
    %69 = tpu.matmul %66, %67, %cst_33 {dimension_numbers = #tpu.dot_dimension_numbers<[2], [2], [1], [1], [0, 0, 0, 1, 1, 1], [0], [0]>} : vector<1x8x8xbf16>, vector<1x8x8xbf16>, vector<1x8x8xf32> -> vector<1x8x8xf32>
    "tpu.trace_stop"() : () -> ()
    %cst_34 = arith.constant dense<0xFF800000> : vector<1x8xf32>
    %70 = vector.multi_reduction <maximumf>, %69, %cst_34 [2] : vector<1x8x8xf32> to vector<1x8xf32>
    %71 = vector.shape_cast %70 : vector<1x8xf32> to vector<1x8x1xf32>
    %72 = vector.broadcast %71 : vector<1x8x1xf32> to vector<1x8x8xf32>
    %73 = arith.subf %69, %72 : vector<1x8x8xf32>
    %74 = math.exp %73 : vector<1x8x8xf32>
    %cst_35 = arith.constant dense<0.000000e+00> : vector<1x8xf32>
    %75 = vector.multi_reduction <add>, %74, %cst_35 [2] : vector<1x8x8xf32> to vector<1x8xf32>
    %76 = vector.shape_cast %75 : vector<1x8xf32> to vector<1x8x1xf32>
    %77 = tpu.reciprocal %76 {approx = true} : vector<1x8x1xf32> -> vector<1x8x1xf32>
    %78 = vector.broadcast %77 : vector<1x8x1xf32> to vector<1x8x8xf32>
    %79 = arith.mulf %74, %78 : vector<1x8x8xf32>
    %80 = arith.truncf %79 : vector<1x8x8xf32> to vector<1x8x8xbf16>
    "tpu.trace_start"() <{level = 10 : i32, message = "bqk,bkd->bqd"}> : () -> ()
    %cst_36 = arith.constant dense<0.000000e+00> : vector<1x8x8xf32>
    %81 = tpu.matmul %80, %68, %cst_36 {dimension_numbers = #tpu.dot_dimension_numbers<[2], [1], [1], [2], [0, 0, 0, 1, 1, 2], [0], [0]>} : vector<1x8x8xbf16>, vector<1x8x8xbf16>, vector<1x8x8xf32> -> vector<1x8x8xf32>
    "tpu.trace_stop"() : () -> ()
    %82 = vector.shape_cast %81 : vector<1x8x8xf32> to vector<8x8xf32>
    %83 = arith.truncf %82 : vector<8x8xf32> to vector<8x8xbf16>
    %c0_37 = arith.constant 0 : index
    %c16 = arith.constant 16 : index
    %84 = vector.load %arg21[%c0_37, %c16] : memref<8x32xbf16, #tpu.memory_space<vmem>>, vector<8x8xbf16>
    tpu.vector_store %arg21[%c0_37, %c16], %83 {strides = array<i32>} : memref<8x32xbf16, #tpu.memory_space<vmem>>, vector<8x8xbf16>,
    %85 = vector.extract_strided_slice %13 {offsets = [0, 0, 24], sizes = [1, 8, 8], strides = [1, 1, 1]} : vector<1x8x32xbf16> to vector<1x8x8xbf16>
    %86 = vector.extract_strided_slice %20 {offsets = [0, 0, 24], sizes = [1, 8, 8], strides = [1, 1, 1]} : vector<1x8x32xbf16> to vector<1x8x8xbf16>
    %87 = vector.extract_strided_slice %27 {offsets = [0, 0, 24], sizes = [1, 8, 8], strides = [1, 1, 1]} : vector<1x8x32xbf16> to vector<1x8x8xbf16>
    "tpu.trace_start"() <{level = 10 : i32, message = "bqd,bkd->bqk"}> : () -> ()
    %cst_38 = arith.constant dense<0.000000e+00> : vector<1x8x8xf32>
    %88 = tpu.matmul %85, %86, %cst_38 {dimension_numbers = #tpu.dot_dimension_numbers<[2], [2], [1], [1], [0, 0, 0, 1, 1, 1], [0], [0]>} : vector<1x8x8xbf16>, vector<1x8x8xbf16>, vector<1x8x8xf32> -> vector<1x8x8xf32>
    "tpu.trace_stop"() : () -> ()
    %cst_39 = arith.constant dense<0xFF800000> : vector<1x8xf32>
    %89 = vector.multi_reduction <maximumf>, %88, %cst_39 [2] : vector<1x8x8xf32> to vector<1x8xf32>
    %90 = vector.shape_cast %89 : vector<1x8xf32> to vector<1x8x1xf32>
    %91 = vector.broadcast %90 : vector<1x8x1xf32> to vector<1x8x8xf32>
    %92 = arith.subf %88, %91 : vector<1x8x8xf32>
    %93 = math.exp %92 : vector<1x8x8xf32>
    %cst_40 = arith.constant dense<0.000000e+00> : vector<1x8xf32>
    %94 = vector.multi_reduction <add>, %93, %cst_40 [2] : vector<1x8x8xf32> to vector<1x8xf32>
    %95 = vector.shape_cast %94 : vector<1x8xf32> to vector<1x8x1xf32>
    %96 = tpu.reciprocal %95 {approx = true} : vector<1x8x1xf32> -> vector<1x8x1xf32>
    %97 = vector.broadcast %96 : vector<1x8x1xf32> to vector<1x8x8xf32>
    %98 = arith.mulf %93, %97 : vector<1x8x8xf32>
    %99 = arith.truncf %98 : vector<1x8x8xf32> to vector<1x8x8xbf16>
    "tpu.trace_start"() <{level = 10 : i32, message = "bqk,bkd->bqd"}> : () -> ()
    %cst_41 = arith.constant dense<0.000000e+00> : vector<1x8x8xf32>
    %100 = tpu.matmul %99, %87, %cst_41 {dimension_numbers = #tpu.dot_dimension_numbers<[2], [1], [1], [2], [0, 0, 0, 1, 1, 2], [0], [0]>} : vector<1x8x8xbf16>, vector<1x8x8xbf16>, vector<1x8x8xf32> -> vector<1x8x8xf32>
    "tpu.trace_stop"() : () -> ()
    %101 = vector.shape_cast %100 : vector<1x8x8xf32> to vector<8x8xf32>
    %102 = arith.truncf %101 : vector<8x8xf32> to vector<8x8xbf16>
    %c0_42 = arith.constant 0 : index
    %c24 = arith.constant 24 : index
    %103 = vector.load %arg21[%c0_42, %c24] : memref<8x32xbf16, #tpu.memory_space<vmem>>, vector<8x8xbf16>
    tpu.vector_store %arg21[%c0_42, %c24], %102 {strides = array<i32>} : memref<8x32xbf16, #tpu.memory_space<vmem>>, vector<8x8xbf16>,
    %c0_43 = arith.constant 0 : index
    %c0_44 = arith.constant 0 : index
    %104 = vector.load %arg21[%c0_43, %c0_44] : memref<8x32xbf16, #tpu.memory_space<vmem>>, vector<8x32xbf16>
    %c0_45 = arith.constant 0 : index
    %c0_46 = arith.constant 0 : index
    %105 = vector.load %arg10[%c0_45, %c0_46] : memref<32x32xbf16, #tpu.memory_space<vmem>>, vector<32x32xbf16>
    %cst_47 = arith.constant dense<0.000000e+00> : vector<8x32xf32>
    %106 = tpu.matmul %104, %105, %cst_47 {dimension_numbers = #tpu.dot_dimension_numbers<[1], [0], [0], [1], [0, 0, 1, 1], [], []>} : vector<8x32xbf16>, vector<32x32xbf16>, vector<8x32xf32> -> vector<8x32xf32>
    %c0_48 = arith.constant 0 : index
    %c0_49 = arith.constant 0 : index
    %107 = vector.load %arg11[%c0_48, %c0_49] : memref<1x32xf32, #tpu.memory_space<vmem>>, vector<1x32xf32>
    %108 = vector.broadcast %107 : vector<1x32xf32> to vector<8x32xf32>
    %109 = arith.addf %106, %108 : vector<8x32xf32>
    %110 = arith.addf %109, %6 : vector<8x32xf32>
    %c0_50 = arith.constant 0 : index
    %c0_51 = arith.constant 0 : index
    %111 = vector.load %arg12[%c0_50, %c0_51] : memref<1x32xf32, #tpu.memory_space<vmem>>, vector<1x32xf32>
    %c0_52 = arith.constant 0 : index
    %c0_53 = arith.constant 0 : index
    %112 = vector.load %arg13[%c0_52, %c0_53] : memref<1x32xf32, #tpu.memory_space<vmem>>, vector<1x32xf32>
    %cst_54 = arith.constant dense<0.000000e+00> : vector<8xf32>
    %113 = vector.multi_reduction <add>, %110, %cst_54 [1] : vector<8x32xf32> to vector<8xf32>
    %114 = vector.shape_cast %113 : vector<8xf32> to vector<8x1xf32>
    %cst_55 = arith.constant 3.200000e+01 : f32
    %115 = vector.broadcast %cst_55 : f32 to vector<8x1xf32>
    %116 = arith.divf %114, %115 : vector<8x1xf32>
    %117 = vector.broadcast %116 : vector<8x1xf32> to vector<8x32xf32>
    %118 = arith.subf %110, %117 : vector<8x32xf32>
    %119 = arith.mulf %118, %118 : vector<8x32xf32>
    %cst_56 = arith.constant dense<0.000000e+00> : vector<8xf32>
    %120 = vector.multi_reduction <add>, %119, %cst_56 [1] : vector<8x32xf32> to vector<8xf32>
    %121 = vector.shape_cast %120 : vector<8xf32> to vector<8x1xf32>
    %cst_57 = arith.constant 3.200000e+01 : f32
    %122 = vector.broadcast %cst_57 : f32 to vector<8x1xf32>
    %123 = arith.divf %121, %122 : vector<8x1xf32>
    %124 = vector.broadcast %116 : vector<8x1xf32> to vector<8x32xf32>
    %125 = arith.subf %110, %124 : vector<8x32xf32>
    %cst_58 = arith.constant 9.99999974E-6 : f32
    %126 = vector.broadcast %cst_58 : f32 to vector<8x1xf32>
    %127 = arith.addf %123, %126 : vector<8x1xf32>
    %128 = math.rsqrt %127 : vector<8x1xf32>
    %129 = vector.broadcast %128 : vector<8x1xf32> to vector<8x32xf32>
    %130 = arith.mulf %125, %129 : vector<8x32xf32>
    %131 = vector.broadcast %111 : vector<1x32xf32> to vector<8x32xf32>
    %132 = arith.mulf %130, %131 : vector<8x32xf32>
    %133 = vector.broadcast %112 : vector<1x32xf32> to vector<8x32xf32>
    %134 = arith.addf %132, %133 : vector<8x32xf32>
    %135 = arith.truncf %134 : vector<8x32xf32> to vector<8x32xbf16>
    %c0_59 = arith.constant 0 : index
    %c0_60 = arith.constant 0 : index
    %136 = vector.load %arg14[%c0_59, %c0_60] : memref<32x128xbf16, #tpu.memory_space<vmem>>, vector<32x128xbf16>
    %cst_61 = arith.constant dense<0.000000e+00> : vector<8x128xf32>
    %137 = tpu.matmul %135, %136, %cst_61 {dimension_numbers = #tpu.dot_dimension_numbers<[1], [0], [0], [1], [0, 0, 1, 1], [], []>} : vector<8x32xbf16>, vector<32x128xbf16>, vector<8x128xf32> -> vector<8x128xf32>
    %c0_62 = arith.constant 0 : index
    %c0_63 = arith.constant 0 : index
    %138 = vector.load %arg15[%c0_62, %c0_63] : memref<1x128xf32, #tpu.memory_space<vmem>>, vector<1x128xf32>
    %139 = vector.broadcast %138 : vector<1x128xf32> to vector<8x128xf32>
    %140 = arith.addf %137, %139 : vector<8x128xf32>
    %141 = arith.negf %140 : vector<8x128xf32>
    %142 = math.exp %141 : vector<8x128xf32>
    %cst_64 = arith.constant 1.000000e+00 : f32
    %143 = vector.broadcast %cst_64 : f32 to vector<8x128xf32>
    %144 = arith.addf %143, %142 : vector<8x128xf32>
    %145 = arith.divf %143, %144 : vector<8x128xf32>
    %146 = arith.mulf %140, %145 : vector<8x128xf32>
    %147 = arith.truncf %146 : vector<8x128xf32> to vector<8x128xbf16>
    %c0_65 = arith.constant 0 : index
    %c0_66 = arith.constant 0 : index
    %148 = vector.load %arg16[%c0_65, %c0_66] : memref<128x32xbf16, #tpu.memory_space<vmem>>, vector<128x32xbf16>
    %cst_67 = arith.constant dense<0.000000e+00> : vector<8x32xf32>
    %149 = tpu.matmul %147, %148, %cst_67 {dimension_numbers = #tpu.dot_dimension_numbers<[1], [0], [0], [1], [0, 0, 1, 1], [], []>} : vector<8x128xbf16>, vector<128x32xbf16>, vector<8x32xf32> -> vector<8x32xf32>
    %c0_68 = arith.constant 0 : index
    %c0_69 = arith.constant 0 : index
    %150 = vector.load %arg17[%c0_68, %c0_69] : memref<1x32xf32, #tpu.memory_space<vmem>>, vector<1x32xf32>
    %151 = vector.broadcast %150 : vector<1x32xf32> to vector<8x32xf32>
    %152 = arith.addf %149, %151 : vector<8x32xf32>
    %153 = arith.addf %152, %134 : vector<8x32xf32>
    %c0_70 = arith.constant 0 : index
    %c0_71 = arith.constant 0 : index
    %154 = vector.load %arg18[%c0_70, %c0_71] : memref<1x32xf32, #tpu.memory_space<vmem>>, vector<1x32xf32>
    %c0_72 = arith.constant 0 : index
    %c0_73 = arith.constant 0 : index
    %155 = vector.load %arg19[%c0_72, %c0_73] : memref<1x32xf32, #tpu.memory_space<vmem>>, vector<1x32xf32>
    %cst_74 = arith.constant dense<0.000000e+00> : vector<8xf32>
    %156 = vector.multi_reduction <add>, %153, %cst_74 [1] : vector<8x32xf32> to vector<8xf32>
    %157 = vector.shape_cast %156 : vector<8xf32> to vector<8x1xf32>
    %cst_75 = arith.constant 3.200000e+01 : f32
    %158 = vector.broadcast %cst_75 : f32 to vector<8x1xf32>
    %159 = arith.divf %157, %158 : vector<8x1xf32>
    %160 = vector.broadcast %159 : vector<8x1xf32> to vector<8x32xf32>
    %161 = arith.subf %153, %160 : vector<8x32xf32>
    %162 = arith.mulf %161, %161 : vector<8x32xf32>
    %cst_76 = arith.constant dense<0.000000e+00> : vector<8xf32>
    %163 = vector.multi_reduction <add>, %162, %cst_76 [1] : vector<8x32xf32> to vector<8xf32>
    %164 = vector.shape_cast %163 : vector<8xf32> to vector<8x1xf32>
    %cst_77 = arith.constant 3.200000e+01 : f32
    %165 = vector.broadcast %cst_77 : f32 to vector<8x1xf32>
    %166 = arith.divf %164, %165 : vector<8x1xf32>
    %167 = vector.broadcast %159 : vector<8x1xf32> to vector<8x32xf32>
    %168 = arith.subf %153, %167 : vector<8x32xf32>
    %cst_78 = arith.constant 9.99999974E-6 : f32
    %169 = vector.broadcast %cst_78 : f32 to vector<8x1xf32>
    %170 = arith.addf %166, %169 : vector<8x1xf32>
    %171 = math.rsqrt %170 : vector<8x1xf32>
    %172 = vector.broadcast %171 : vector<8x1xf32> to vector<8x32xf32>
    %173 = arith.mulf %168, %172 : vector<8x32xf32>
    %174 = vector.broadcast %154 : vector<1x32xf32> to vector<8x32xf32>
    %175 = arith.mulf %173, %174 : vector<8x32xf32>
    %176 = vector.broadcast %155 : vector<1x32xf32> to vector<8x32xf32>
    %177 = arith.addf %175, %176 : vector<8x32xf32>
    %178 = vector.shape_cast %177 : vector<8x32xf32> to vector<1x8x32xf32>
    %179 = arith.truncf %178 : vector<1x8x32xf32> to vector<1x8x32xbf16>
    %c0_79 = arith.constant 0 : index
    %c0_80 = arith.constant 0 : index
    %c0_81 = arith.constant 0 : index
    %180 = vector.load %arg20[%c0_79, %c0_80, %c0_81] : memref<1x8x32xbf16, #tpu.memory_space<vmem>>, vector<1x8x32xbf16>
    tpu.vector_store %arg20[%c0_79, %c0_80, %c0_81], %179 {strides = array<i32>} : memref<1x8x32xbf16, #tpu.memory_space<vmem>>, vector<1x8x32xbf16>,
    return
  }
  func.func @transform_0(%arg0: i32) -> (i32, i32, i32) {
    %c0_i32 = arith.constant 0 : i32
    %c0_i32_0 = arith.constant 0 : i32
    %c0_i32_1 = arith.constant 0 : i32
    return %arg0, %c0_i32, %c0_i32_0 : i32, i32, i32
  }
  func.func @transform_1(%arg0: i32) -> (i32, i32, i32) {
    %c0_i32 = arith.constant 0 : i32
    %c0_i32_0 = arith.constant 0 : i32
    %c0_i32_1 = arith.constant 0 : i32
    return %arg0, %c0_i32, %c0_i32_0 : i32, i32, i32
  }
  func.func @transform_2(%arg0: i32) -> (i32, i32, i32) {
    %c0_i32 = arith.constant 0 : i32
    %c0_i32_0 = arith.constant 0 : i32
    %c0_i32_1 = arith.constant 0 : i32
    return %arg0, %c0_i32, %c0_i32_0 : i32, i32, i32
  }
  func.func @transform_3(%arg0: i32) -> (i32, i32) {
    %c0_i32 = arith.constant 0 : i32
    %c0_i32_0 = arith.constant 0 : i32
    %c0_i32_1 = arith.constant 0 : i32
    return %c0_i32, %c0_i32_0 : i32, i32
  }
  func.func @transform_4(%arg0: i32) -> (i32, i32) {
    %c0_i32 = arith.constant 0 : i32
    %c0_i32_0 = arith.constant 0 : i32
    %c0_i32_1 = arith.constant 0 : i32
    return %c0_i32, %c0_i32_0 : i32, i32
  }
  func.func @transform_5(%arg0: i32) -> (i32, i32) {
    %c0_i32 = arith.constant 0 : i32
    %c0_i32_0 = arith.constant 0 : i32
    %c0_i32_1 = arith.constant 0 : i32
    return %c0_i32, %c0_i32_0 : i32, i32
  }
  func.func @transform_6(%arg0: i32) -> (i32, i32) {
    %c0_i32 = arith.constant 0 : i32
    %c0_i32_0 = arith.constant 0 : i32
    %c0_i32_1 = arith.constant 0 : i32
    return %c0_i32, %c0_i32_0 : i32, i32
  }
  func.func @transform_7(%arg0: i32) -> (i32, i32) {
    %c0_i32 = arith.constant 0 : i32
    %c0_i32_0 = arith.constant 0 : i32
    %c0_i32_1 = arith.constant 0 : i32
    return %c0_i32, %c0_i32_0 : i32, i32
  }
  func.func @transform_8(%arg0: i32) -> (i32, i32) {
    %c0_i32 = arith.constant 0 : i32
    %c0_i32_0 = arith.constant 0 : i32
    %c0_i32_1 = arith.constant 0 : i32
    return %c0_i32, %c0_i32_0 : i32, i32
  }
  func.func @transform_9(%arg0: i32) -> (i32, i32) {
    %c0_i32 = arith.constant 0 : i32
    %c0_i32_0 = arith.constant 0 : i32
    %c0_i32_1 = arith.constant 0 : i32
    return %c0_i32, %c0_i32_0 : i32, i32
  }
  func.func @transform_10(%arg0: i32) -> (i32, i32) {
    %c0_i32 = arith.constant 0 : i32
    %c0_i32_0 = arith.constant 0 : i32
    %c0_i32_1 = arith.constant 0 : i32
    return %c0_i32, %c0_i32_0 : i32, i32
  }
  func.func @transform_11(%arg0: i32) -> (i32, i32) {
    %c0_i32 = arith.constant 0 : i32
    %c0_i32_0 = arith.constant 0 : i32
    %c0_i32_1 = arith.constant 0 : i32
    return %c0_i32, %c0_i32_0 : i32, i32
  }
  func.func @transform_12(%arg0: i32) -> (i32, i32) {
    %c0_i32 = arith.constant 0 : i32
    %c0_i32_0 = arith.constant 0 : i32
    %c0_i32_1 = arith.constant 0 : i32
    return %c0_i32, %c0_i32_0 : i32, i32
  }
  func.func @transform_13(%arg0: i32) -> (i32, i32) {
    %c0_i32 = arith.constant 0 : i32
    %c0_i32_0 = arith.constant 0 : i32
    %c0_i32_1 = arith.constant 0 : i32
    return %c0_i32, %c0_i32_0 : i32, i32
  }
  func.func @transform_14(%arg0: i32) -> (i32, i32) {
    %c0_i32 = arith.constant 0 : i32
    %c0_i32_0 = arith.constant 0 : i32
    %c0_i32_1 = arith.constant 0 : i32
    return %c0_i32, %c0_i32_0 : i32, i32
  }
  func.func @transform_15(%arg0: i32) -> (i32, i32) {
    %c0_i32 = arith.constant 0 : i32
    %c0_i32_0 = arith.constant 0 : i32
    %c0_i32_1 = arith.constant 0 : i32
    return %c0_i32, %c0_i32_0 : i32, i32
  }
  func.func @transform_16(%arg0: i32) -> (i32, i32) {
    %c0_i32 = arith.constant 0 : i32
    %c0_i32_0 = arith.constant 0 : i32
    %c0_i32_1 = arith.constant 0 : i32
    return %c0_i32, %c0_i32_0 : i32, i32
  }
  func.func @transform_17(%arg0: i32) -> (i32, i32) {
    %c0_i32 = arith.constant 0 : i32
    %c0_i32_0 = arith.constant 0 : i32
    %c0_i32_1 = arith.constant 0 : i32
    return %c0_i32, %c0_i32_0 : i32, i32
  }
  func.func @transform_18(%arg0: i32) -> (i32, i32) {
    %c0_i32 = arith.constant 0 : i32
    %c0_i32_0 = arith.constant 0 : i32
    %c0_i32_1 = arith.constant 0 : i32
    return %c0_i32, %c0_i32_0 : i32, i32
  }
  func.func @transform_19(%arg0: i32) -> (i32, i32, i32) {
    %c0_i32 = arith.constant 0 : i32
    %c0_i32_0 = arith.constant 0 : i32
    %c0_i32_1 = arith.constant 0 : i32
    return %arg0, %c0_i32, %c0_i32_0 : i32, i32, i32
  }
}

</mosaic_0001>

<llo_original>
// kernel: tpu_custom_call.1
$region0: #{tpu_custom_call.1}
  #allocation0 [shape = 'u32[]', space=smem, size = 0x4, offset = 0x4, fixed_abs, tag = 'smem constant byte address 0x4 - core index']
  #allocation1 [shape = 'u32[144,128]{1,0:T(1,128)}', space=vmem, size = 0x12000, scoped, tag = 'internal scratch']
  #allocation2 [shape = 'bf16[8,32]{1,0:T(8,128)(2,1)}', space=vmem, size = 0x800, scoped, tag = 'scratch operand']
  %s0 = inlined_call_operand.hbm [shape: bf16[2,8,32], index: 0, kind: input, shape index: {}]
  %s1 = inlined_call_operand.hbm [shape: bf16[2,8,32], index: 1, kind: input, shape index: {}]
  %s2 = inlined_call_operand.hbm [shape: bf16[2,8,32], index: 2, kind: input, shape index: {}]
  %s3 = inlined_call_operand.vmem [shape: bf16[32,32], index: 3, kind: input, shape index: {}]
  %s4 = inlined_call_operand.vmem [shape: f32[1,32], index: 4, kind: input, shape index: {}]
  %s5 = inlined_call_operand.vmem [shape: bf16[32,32], index: 5, kind: input, shape index: {}]
  %s6 = inlined_call_operand.vmem [shape: f32[1,32], index: 6, kind: input, shape index: {}]
  %s7 = inlined_call_operand.vmem [shape: bf16[32,32], index: 7, kind: input, shape index: {}]
  %s8 = inlined_call_operand.vmem [shape: f32[1,32], index: 8, kind: input, shape index: {}]
  %s9 = inlined_call_operand.vmem [shape: bf16[32,32], index: 9, kind: input, shape index: {}]
  %s10 = inlined_call_operand.vmem [shape: f32[1,32], index: 10, kind: input, shape index: {}]
  %s11 = inlined_call_operand.vmem [shape: f32[1,32], index: 11, kind: input, shape index: {}]
  %s12 = inlined_call_operand.vmem [shape: f32[1,32], index: 12, kind: input, shape index: {}]
  %s13 = inlined_call_operand.vmem [shape: bf16[32,128], index: 13, kind: input, shape index: {}]
  %s14 = inlined_call_operand.vmem [shape: f32[1,128], index: 14, kind: input, shape index: {}]
  %s15 = inlined_call_operand.vmem [shape: bf16[128,32], index: 15, kind: input, shape index: {}]
  %s16 = inlined_call_operand.vmem [shape: f32[1,32], index: 16, kind: input, shape index: {}]
  %s17 = inlined_call_operand.vmem [shape: f32[1,32], index: 17, kind: input, shape index: {}]
  %s18 = inlined_call_operand.vmem [shape: f32[1,32], index: 18, kind: input, shape index: {}]
  %s19 = inlined_call_operand.hbm [shape: bf16[2,8,32], index: 19, kind: output, shape index: {}]
  %s20 = sld [smem:[#allocation0]]
  $region121: #{tpu_custom_call.1} parent=0
    _
  %s22 = ssub.s32 1, %s20
  %s23 = scalar_select 0, %s22, %s20
  $region1: #{tpu_custom_call.1} parent=0
    #allocation3 [shape = 'u8[4096]{0}', space=vmem, size = 0x1000, scoped, tag = 'input window, operand 0']
    #allocation4 [shape = 's32[2]{0}', space=sflag, size = 0x8, scoped, tag = 'scoped memory for tpu_custom_call.1']
    #allocation5 [shape = 's32[2]{0}', space=sflag, size = 0x8, scoped, tag = 'scoped memory for tpu_custom_call.1']
    #allocation6 [shape = 'u8[4096]{0}', space=vmem, size = 0x1000, scoped, tag = 'input window, operand 1']
    #allocation7 [shape = 's32[2]{0}', space=sflag, size = 0x8, scoped, tag = 'scoped memory for tpu_custom_call.1']
    #allocation8 [shape = 'u8[4096]{0}', space=vmem, size = 0x1000, scoped, tag = 'input window, operand 2']
    #allocation9 [shape = 'u8[4096]{0}', space=vmem, size = 0x1000, scoped, tag = 'output window, operand 0']
    %24 = vsyncpa [#allocation4], 0
    %s25 = scalar_lea.sflag [#allocation4], 1
    %26 = vsyncpa %s25, 0
    %27 = vsyncpa [#allocation7], 0
    %s28 = scalar_lea.sflag [#allocation7], 1
    %29 = vsyncpa %s28, 0
    %30 = vsyncpa [#allocation5], 0
    %s31 = scalar_lea.sflag [#allocation5], 1
    %32 = vsyncpa %s31, 0
    loop: start=0, step=1, limit=4
    $region2: #{tpu_custom_call.1} parent=1 // loop_pre_header
      _
    $region3: #{tpu_custom_call.1} parent=1 // loop_header
      %s34 = sphi 0, %s38
      %p35 = scmp.ge.s32.totalorder %s34, 4
      %s44 = sphi 0, %s46
      %s47 = sphi 0, %s44
      %s48 = sphi 0, %s47
      %s64 = sphi 0, %s48
      %s70 = sphi 0, %s72
      %s73 = sphi 0, %s70
      %s74 = sphi 0, %s73
      %s90 = sphi 0, %s74
      %s96 = sphi 0, %s98
      %s99 = sphi 0, %s96
      %s100 = sphi 0, %s99
      %s116 = sphi 0, %s100
      %s120 = sphi 0, %s120
      %s122 = sphi 0, %s120
      %s123 = sphi 0, %s122
      %s137 = sphi 0, %s123
      %s141 = sphi 0, %s141
      %s143 = sphi 0, %s141
      %s144 = sphi 0, %s143
      %s158 = sphi 0, %s144
      %s162 = sphi 0, %s162
      %s164 = sphi 0, %s162
      %s165 = sphi 0, %s164
      %s179 = sphi 0, %s165
      %s183 = sphi 0, %s183
      %s185 = sphi 0, %s183
      %s186 = sphi 0, %s185
      %s200 = sphi 0, %s186
      %s204 = sphi 0, %s204
      %s206 = sphi 0, %s204
      %s207 = sphi 0, %s206
      %s221 = sphi 0, %s207
      %s225 = sphi 0, %s225
      %s227 = sphi 0, %s225
      %s228 = sphi 0, %s227
      %s242 = sphi 0, %s228
      %s246 = sphi 0, %s246
      %s248 = sphi 0, %s246
      %s249 = sphi 0, %s248
      %s263 = sphi 0, %s249
      %s267 = sphi 0, %s267
      %s269 = sphi 0, %s267
      %s270 = sphi 0, %s269
      %s284 = sphi 0, %s270
      %s288 = sphi 0, %s288
      %s290 = sphi 0, %s288
      %s291 = sphi 0, %s290
      %s305 = sphi 0, %s291
      %s309 = sphi 0, %s309
      %s311 = sphi 0, %s309
      %s312 = sphi 0, %s311
      %s326 = sphi 0, %s312
      %s330 = sphi 0, %s330
      %s332 = sphi 0, %s330
      %s333 = sphi 0, %s332
      %s347 = sphi 0, %s333
      %s351 = sphi 0, %s351
      %s353 = sphi 0, %s351
      %s354 = sphi 0, %s353
      %s368 = sphi 0, %s354
      %s372 = sphi 0, %s372
      %s374 = sphi 0, %s372
      %s375 = sphi 0, %s374
      %s389 = sphi 0, %s375
      %s393 = sphi 0, %s393
      %s395 = sphi 0, %s393
      %s396 = sphi 0, %s395
      %s410 = sphi 0, %s396
      %s414 = sphi 0, %s414
      %s416 = sphi 0, %s414
      %s417 = sphi 0, %s416
      %s431 = sphi 0, %s417
      %s435 = sphi 0, %s435
      %s437 = sphi 0, %s435
      %s438 = sphi 0, %s437
      %s452 = sphi 0, %s438
      %s458 = sphi 0, %s460
      %s461 = sphi 0, %s458
      %s462 = sphi 0, %s461
      %s478 = sphi 0, %s462
    $region4: #{tpu_custom_call.1} parent=1 // loop_header_branch
      %37 = sbr.rel (%p35) target = $region8
    $region5: #{tpu_custom_call.1} parent=1 // loop_body
      %s39 = ssub.s32 %s34, 1
      %s40 = ssub.s32 %s34, 2
      %s41 = sadd.s32 %s34, 1
      %s42 = ssub.s32 %s34, %s41
      %p43 = scmp.eq.s32.totalorder %s42, 0
      %s45 = sadd.s32 %s44, 1
      %s46 = scalar_select %p43, %s44, %s45
      %p49 = pneg %p43
      %p50 = scmp.eq.s32.totalorder %s34, 1
      %p51 = por %p49, %p50
      %p52 = scmp.ne.s32.totalorder %s44, %s47
      %p53 = scmp.eq.s32.totalorder %s34, 0
      %p54 = por %p52, %p53
      %p55 = scmp.ne.s32.totalorder %s44, %s47
      %p56 = scmp.eq.s32.totalorder %s39, 1
      %p57 = por %p55, %p56
      %p58 = scmp.ne.s32.totalorder %s47, %s48
      %p59 = scmp.eq.s32.totalorder %s39, 0
      %p60 = por %p58, %p59
      %p61 = scmp.ne.s32.totalorder %s47, %s48
      %p62 = scmp.eq.s32.totalorder %s40, 1
      %p63 = por %p61, %p62
      %p65 = scmp.ne.s32.totalorder %s48, %s64
      %p66 = scmp.eq.s32.totalorder %s40, 0
      %p67 = por %p65, %p66
      %s68 = ssub.s32 %s34, %s41
      %p69 = scmp.eq.s32.totalorder %s68, 0
      %s71 = sadd.s32 %s70, 1
      %s72 = scalar_select %p69, %s70, %s71
      %p75 = pneg %p69
      %p76 = scmp.eq.s32.totalorder %s34, 1
      %p77 = por %p75, %p76
      %p78 = scmp.ne.s32.totalorder %s70, %s73
      %p79 = scmp.eq.s32.totalorder %s34, 0
      %p80 = por %p78, %p79
      %p81 = scmp.ne.s32.totalorder %s70, %s73
      %p82 = scmp.eq.s32.totalorder %s39, 1
      %p83 = por %p81, %p82
      %p84 = scmp.ne.s32.totalorder %s73, %s74
      %p85 = scmp.eq.s32.totalorder %s39, 0
      %p86 = por %p84, %p85
      %p87 = scmp.ne.s32.totalorder %s73, %s74
      %p88 = scmp.eq.s32.totalorder %s40, 1
      %p89 = por %p87, %p88
      %p91 = scmp.ne.s32.totalorder %s74, %s90
      %p92 = scmp.eq.s32.totalorder %s40, 0
      %p93 = por %p91, %p92
      %s94 = ssub.s32 %s34, %s41
      %p95 = scmp.eq.s32.totalorder %s94, 0
      %s97 = sadd.s32 %s96, 1
      %s98 = scalar_select %p95, %s96, %s97
      %p101 = pneg %p95
      %p102 = scmp.eq.s32.totalorder %s34, 1
      %p103 = por %p101, %p102
      %p104 = scmp.ne.s32.totalorder %s96, %s99
      %p105 = scmp.eq.s32.totalorder %s34, 0
      %p106 = por %p104, %p105
      %p107 = scmp.ne.s32.totalorder %s96, %s99
      %p108 = scmp.eq.s32.totalorder %s39, 1
      %p109 = por %p107, %p108
      %p110 = scmp.ne.s32.totalorder %s99, %s100
      %p111 = scmp.eq.s32.totalorder %s39, 0
      %p112 = por %p110, %p111
      %p113 = scmp.ne.s32.totalorder %s99, %s100
      %p114 = scmp.eq.s32.totalorder %s40, 1
      %p115 = por %p113, %p114
      %p117 = scmp.ne.s32.totalorder %s100, %s116
      %p118 = scmp.eq.s32.totalorder %s40, 0
      %p119 = por %p117, %p118
      %s121 = sadd.s32 %s120, 1
      %p124 = scmp.eq.s32.totalorder %s34, 1
      %p125 = scmp.ne.s32.totalorder %s120, %s122
      %p126 = scmp.eq.s32.totalorder %s34, 0
      %p127 = por %p125, %p126
      %p128 = scmp.ne.s32.totalorder %s120, %s122
      %p129 = scmp.eq.s32.totalorder %s39, 1
      %p130 = por %p128, %p129
      %p131 = scmp.ne.s32.totalorder %s122, %s123
      %p132 = scmp.eq.s32.totalorder %s39, 0
      %p133 = por %p131, %p132
      %p134 = scmp.ne.s32.totalorder %s122, %s123
      %p135 = scmp.eq.s32.totalorder %s40, 1
      %p136 = por %p134, %p135
      %p138 = scmp.ne.s32.totalorder %s123, %s137
      %p139 = scmp.eq.s32.totalorder %s40, 0
      %p140 = por %p138, %p139
      %s142 = sadd.s32 %s141, 1
      %p145 = scmp.eq.s32.totalorder %s34, 1
      %p146 = scmp.ne.s32.totalorder %s141, %s143
      %p147 = scmp.eq.s32.totalorder %s34, 0
      %p148 = por %p146, %p147
      %p149 = scmp.ne.s32.totalorder %s141, %s143
      %p150 = scmp.eq.s32.totalorder %s39, 1
      %p151 = por %p149, %p150
      %p152 = scmp.ne.s32.totalorder %s143, %s144
      %p153 = scmp.eq.s32.totalorder %s39, 0
      %p154 = por %p152, %p153
      %p155 = scmp.ne.s32.totalorder %s143, %s144
      %p156 = scmp.eq.s32.totalorder %s40, 1
      %p157 = por %p155, %p156
      %p159 = scmp.ne.s32.totalorder %s144, %s158
      %p160 = scmp.eq.s32.totalorder %s40, 0
      %p161 = por %p159, %p160
      %s163 = sadd.s32 %s162, 1
      %p166 = scmp.eq.s32.totalorder %s34, 1
      %p167 = scmp.ne.s32.totalorder %s162, %s164
      %p168 = scmp.eq.s32.totalorder %s34, 0
      %p169 = por %p167, %p168
      %p170 = scmp.ne.s32.totalorder %s162, %s164
      %p171 = scmp.eq.s32.totalorder %s39, 1
      %p172 = por %p170, %p171
      %p173 = scmp.ne.s32.totalorder %s164, %s165
      %p174 = scmp.eq.s32.totalorder %s39, 0
      %p175 = por %p173, %p174
      %p176 = scmp.ne.s32.totalorder %s164, %s165
      %p177 = scmp.eq.s32.totalorder %s40, 1
      %p178 = por %p176, %p177
      %p180 = scmp.ne.s32.totalorder %s165, %s179
      %p181 = scmp.eq.s32.totalorder %s40, 0
      %p182 = por %p180, %p181
      %s184 = sadd.s32 %s183, 1
      %p187 = scmp.eq.s32.totalorder %s34, 1
      %p188 = scmp.ne.s32.totalorder %s183, %s185
      %p189 = scmp.eq.s32.totalorder %s34, 0
      %p190 = por %p188, %p189
      %p191 = scmp.ne.s32.totalorder %s183, %s185
      %p192 = scmp.eq.s32.totalorder %s39, 1
      %p193 = por %p191, %p192
      %p194 = scmp.ne.s32.totalorder %s185, %s186
      %p195 = scmp.eq.s32.totalorder %s39, 0
      %p196 = por %p194, %p195
      %p197 = scmp.ne.s32.totalorder %s185, %s186
      %p198 = scmp.eq.s32.totalorder %s40, 1
      %p199 = por %p197, %p198
      %p201 = scmp.ne.s32.totalorder %s186, %s200
      %p202 = scmp.eq.s32.totalorder %s40, 0
      %p203 = por %p201, %p202
      %s205 = sadd.s32 %s204, 1
      %p208 = scmp.eq.s32.totalorder %s34, 1
      %p209 = scmp.ne.s32.totalorder %s204, %s206
      %p210 = scmp.eq.s32.totalorder %s34, 0
      %p211 = por %p209, %p210
      %p212 = scmp.ne.s32.totalorder %s204, %s206
      %p213 = scmp.eq.s32.totalorder %s39, 1
      %p214 = por %p212, %p213
      %p215 = scmp.ne.s32.totalorder %s206, %s207
      %p216 = scmp.eq.s32.totalorder %s39, 0
      %p217 = por %p215, %p216
      %p218 = scmp.ne.s32.totalorder %s206, %s207
      %p219 = scmp.eq.s32.totalorder %s40, 1
      %p220 = por %p218, %p219
      %p222 = scmp.ne.s32.totalorder %s207, %s221
      %p223 = scmp.eq.s32.totalorder %s40, 0
      %p224 = por %p222, %p223
      %s226 = sadd.s32 %s225, 1
      %p229 = scmp.eq.s32.totalorder %s34, 1
      %p230 = scmp.ne.s32.totalorder %s225, %s227
      %p231 = scmp.eq.s32.totalorder %s34, 0
      %p232 = por %p230, %p231
      %p233 = scmp.ne.s32.totalorder %s225, %s227
      %p234 = scmp.eq.s32.totalorder %s39, 1
      %p235 = por %p233, %p234
      %p236 = scmp.ne.s32.totalorder %s227, %s228
      %p237 = scmp.eq.s32.totalorder %s39, 0
      %p238 = por %p236, %p237
      %p239 = scmp.ne.s32.totalorder %s227, %s228
      %p240 = scmp.eq.s32.totalorder %s40, 1
      %p241 = por %p239, %p240
      %p243 = scmp.ne.s32.totalorder %s228, %s242
      %p244 = scmp.eq.s32.totalorder %s40, 0
      %p245 = por %p243, %p244
      %s247 = sadd.s32 %s246, 1
      %p250 = scmp.eq.s32.totalorder %s34, 1
      %p251 = scmp.ne.s32.totalorder %s246, %s248
      %p252 = scmp.eq.s32.totalorder %s34, 0
      %p253 = por %p251, %p252
      %p254 = scmp.ne.s32.totalorder %s246, %s248
      %p255 = scmp.eq.s32.totalorder %s39, 1
      %p256 = por %p254, %p255
      %p257 = scmp.ne.s32.totalorder %s248, %s249
      %p258 = scmp.eq.s32.totalorder %s39, 0
      %p259 = por %p257, %p258
      %p260 = scmp.ne.s32.totalorder %s248, %s249
      %p261 = scmp.eq.s32.totalorder %s40, 1
      %p262 = por %p260, %p261
      %p264 = scmp.ne.s32.totalorder %s249, %s263
      %p265 = scmp.eq.s32.totalorder %s40, 0
      %p266 = por %p264, %p265
      %s268 = sadd.s32 %s267, 1
      %p271 = scmp.eq.s32.totalorder %s34, 1
      %p272 = scmp.ne.s32.totalorder %s267, %s269
      %p273 = scmp.eq.s32.totalorder %s34, 0
      %p274 = por %p272, %p273
      %p275 = scmp.ne.s32.totalorder %s267, %s269
      %p276 = scmp.eq.s32.totalorder %s39, 1
      %p277 = por %p275, %p276
      %p278 = scmp.ne.s32.totalorder %s269, %s270
      %p279 = scmp.eq.s32.totalorder %s39, 0
      %p280 = por %p278, %p279
      %p281 = scmp.ne.s32.totalorder %s269, %s270
      %p282 = scmp.eq.s32.totalorder %s40, 1
      %p283 = por %p281, %p282
      %p285 = scmp.ne.s32.totalorder %s270, %s284
      %p286 = scmp.eq.s32.totalorder %s40, 0
      %p287 = por %p285, %p286
      %s289 = sadd.s32 %s288, 1
      %p292 = scmp.eq.s32.totalorder %s34, 1
      %p293 = scmp.ne.s32.totalorder %s288, %s290
      %p294 = scmp.eq.s32.totalorder %s34, 0
      %p295 = por %p293, %p294
      %p296 = scmp.ne.s32.totalorder %s288, %s290
      %p297 = scmp.eq.s32.totalorder %s39, 1
      %p298 = por %p296, %p297
      %p299 = scmp.ne.s32.totalorder %s290, %s291
      %p300 = scmp.eq.s32.totalorder %s39, 0
      %p301 = por %p299, %p300
      %p302 = scmp.ne.s32.totalorder %s290, %s291
      %p303 = scmp.eq.s32.totalorder %s40, 1
      %p304 = por %p302, %p303
      %p306 = scmp.ne.s32.totalorder %s291, %s305
      %p307 = scmp.eq.s32.totalorder %s40, 0
      %p308 = por %p306, %p307
      %s310 = sadd.s32 %s309, 1
      %p313 = scmp.eq.s32.totalorder %s34, 1
      %p314 = scmp.ne.s32.totalorder %s309, %s311
      %p315 = scmp.eq.s32.totalorder %s34, 0
      %p316 = por %p314, %p315
      %p317 = scmp.ne.s32.totalorder %s309, %s311
      %p318 = scmp.eq.s32.totalorder %s39, 1
      %p319 = por %p317, %p318
      %p320 = scmp.ne.s32.totalorder %s311, %s312
      %p321 = scmp.eq.s32.totalorder %s39, 0
      %p322 = por %p320, %p321
      %p323 = scmp.ne.s32.totalorder %s311, %s312
      %p324 = scmp.eq.s32.totalorder %s40, 1
      %p325 = por %p323, %p324
      %p327 = scmp.ne.s32.totalorder %s312, %s326
      %p328 = scmp.eq.s32.totalorder %s40, 0
      %p329 = por %p327, %p328
      %s331 = sadd.s32 %s330, 1
      %p334 = scmp.eq.s32.totalorder %s34, 1
      %p335 = scmp.ne.s32.totalorder %s330, %s332
      %p336 = scmp.eq.s32.totalorder %s34, 0
      %p337 = por %p335, %p336
      %p338 = scmp.ne.s32.totalorder %s330, %s332
      %p339 = scmp.eq.s32.totalorder %s39, 1
      %p340 = por %p338, %p339
      %p341 = scmp.ne.s32.totalorder %s332, %s333
      %p342 = scmp.eq.s32.totalorder %s39, 0
      %p343 = por %p341, %p342
      %p344 = scmp.ne.s32.totalorder %s332, %s333
      %p345 = scmp.eq.s32.totalorder %s40, 1
      %p346 = por %p344, %p345
      %p348 = scmp.ne.s32.totalorder %s333, %s347
      %p349 = scmp.eq.s32.totalorder %s40, 0
      %p350 = por %p348, %p349
      %s352 = sadd.s32 %s351, 1
      %p355 = scmp.eq.s32.totalorder %s34, 1
      %p356 = scmp.ne.s32.totalorder %s351, %s353
      %p357 = scmp.eq.s32.totalorder %s34, 0
      %p358 = por %p356, %p357
      %p359 = scmp.ne.s32.totalorder %s351, %s353
      %p360 = scmp.eq.s32.totalorder %s39, 1
      %p361 = por %p359, %p360
      %p362 = scmp.ne.s32.totalorder %s353, %s354
      %p363 = scmp.eq.s32.totalorder %s39, 0
      %p364 = por %p362, %p363
      %p365 = scmp.ne.s32.totalorder %s353, %s354
      %p366 = scmp.eq.s32.totalorder %s40, 1
      %p367 = por %p365, %p366
      %p369 = scmp.ne.s32.totalorder %s354, %s368
      %p370 = scmp.eq.s32.totalorder %s40, 0
      %p371 = por %p369, %p370
      %s373 = sadd.s32 %s372, 1
      %p376 = scmp.eq.s32.totalorder %s34, 1
      %p377 = scmp.ne.s32.totalorder %s372, %s374
      %p378 = scmp.eq.s32.totalorder %s34, 0
      %p379 = por %p377, %p378
      %p380 = scmp.ne.s32.totalorder %s372, %s374
      %p381 = scmp.eq.s32.totalorder %s39, 1
      %p382 = por %p380, %p381
      %p383 = scmp.ne.s32.totalorder %s374, %s375
      %p384 = scmp.eq.s32.totalorder %s39, 0
      %p385 = por %p383, %p384
      %p386 = scmp.ne.s32.totalorder %s374, %s375
      %p387 = scmp.eq.s32.totalorder %s40, 1
      %p388 = por %p386, %p387
      %p390 = scmp.ne.s32.totalorder %s375, %s389
      %p391 = scmp.eq.s32.totalorder %s40, 0
      %p392 = por %p390, %p391
      %s394 = sadd.s32 %s393, 1
      %p397 = scmp.eq.s32.totalorder %s34, 1
      %p398 = scmp.ne.s32.totalorder %s393, %s395
      %p399 = scmp.eq.s32.totalorder %s34, 0
      %p400 = por %p398, %p399
      %p401 = scmp.ne.s32.totalorder %s393, %s395
      %p402 = scmp.eq.s32.totalorder %s39, 1
      %p403 = por %p401, %p402
      %p404 = scmp.ne.s32.totalorder %s395, %s396
      %p405 = scmp.eq.s32.totalorder %s39, 0
      %p406 = por %p404, %p405
      %p407 = scmp.ne.s32.totalorder %s395, %s396
      %p408 = scmp.eq.s32.totalorder %s40, 1
      %p409 = por %p407, %p408
      %p411 = scmp.ne.s32.totalorder %s396, %s410
      %p412 = scmp.eq.s32.totalorder %s40, 0
      %p413 = por %p411, %p412
      %s415 = sadd.s32 %s414, 1
      %p418 = scmp.eq.s32.totalorder %s34, 1
      %p419 = scmp.ne.s32.totalorder %s414, %s416
      %p420 = scmp.eq.s32.totalorder %s34, 0
      %p421 = por %p419, %p420
      %p422 = scmp.ne.s32.totalorder %s414, %s416
      %p423 = scmp.eq.s32.totalorder %s39, 1
      %p424 = por %p422, %p423
      %p425 = scmp.ne.s32.totalorder %s416, %s417
      %p426 = scmp.eq.s32.totalorder %s39, 0
      %p427 = por %p425, %p426
      %p428 = scmp.ne.s32.totalorder %s416, %s417
      %p429 = scmp.eq.s32.totalorder %s40, 1
      %p430 = por %p428, %p429
      %p432 = scmp.ne.s32.totalorder %s417, %s431
      %p433 = scmp.eq.s32.totalorder %s40, 0
      %p434 = por %p432, %p433
      %s436 = sadd.s32 %s435, 1
      %p439 = scmp.eq.s32.totalorder %s34, 1
      %p440 = scmp.ne.s32.totalorder %s435, %s437
      %p441 = scmp.eq.s32.totalorder %s34, 0
      %p442 = por %p440, %p441
      %p443 = scmp.ne.s32.totalorder %s435, %s437
      %p444 = scmp.eq.s32.totalorder %s39, 1
      %p445 = por %p443, %p444
      %p446 = scmp.ne.s32.totalorder %s437, %s438
      %p447 = scmp.eq.s32.totalorder %s39, 0
      %p448 = por %p446, %p447
      %p449 = scmp.ne.s32.totalorder %s437, %s438
      %p450 = scmp.eq.s32.totalorder %s40, 1
      %p451 = por %p449, %p450
      %p453 = scmp.ne.s32.totalorder %s438, %s452
      %p454 = scmp.eq.s32.totalorder %s40, 0
      %p455 = por %p453, %p454
      %s456 = ssub.s32 %s34, %s41
      %p457 = scmp.eq.s32.totalorder %s456, 0
      %s459 = sadd.s32 %s458, 1
      %s460 = scalar_select %p457, %s458, %s459
      %p463 = pneg %p457
      %p464 = scmp.eq.s32.totalorder %s34, 1
      %p465 = por %p463, %p464
      %p466 = scmp.ne.s32.totalorder %s458, %s461
      %p467 = scmp.eq.s32.totalorder %s34, 0
      %p468 = por %p466, %p467
      %p469 = scmp.ne.s32.totalorder %s458, %s461
      %p470 = scmp.eq.s32.totalorder %s39, 1
      %p471 = por %p469, %p470
      %p472 = scmp.ne.s32.totalorder %s461, %s462
      %p473 = scmp.eq.s32.totalorder %s39, 0
      %p474 = por %p472, %p473
      %p475 = scmp.ne.s32.totalorder %s461, %s462
      %p476 = scmp.eq.s32.totalorder %s40, 1
      %p477 = por %p475, %p476
      %p479 = scmp.ne.s32.totalorder %s462, %s478
      %p480 = scmp.eq.s32.totalorder %s40, 0
      %p481 = por %p479, %p480
      %p482 = scmp.le.s32.totalorder 1, %s34
      %p483 = scmp.lt.s32.totalorder %s34, 3
      %p484 = pnand %p482, %p483
      %p485 = pneg %p484
      // Predicated region
      $region9: #{tpu_custom_call.1} parent=5 // pred_check
        _
      $region10: #{tpu_custom_call.1} parent=5 // pred_check_branch
        %487 = sbr.rel (%p484) target = $region12
      $region11: #{tpu_custom_call.1} parent=5 // pred_region
        %s488 = ssub.s32 %s34, 1
        // Predicated region
        $region13: #{tpu_custom_call.1} parent=11 // pred_check
          %p489 = pneg %p133
        $region14: #{tpu_custom_call.1} parent=11 // pred_check_branch
          %491 = sbr.rel (%p489) target = $region16
        $region15: #{tpu_custom_call.1} parent=11 // pred_region
          _
        $region16: #{tpu_custom_call.1} parent=11 // pred_fallthru
          _
        // Predicated region
        $region17: #{tpu_custom_call.1} parent=11 // pred_check
          %p492 = pneg %p154
        $region18: #{tpu_custom_call.1} parent=11 // pred_check_branch
          %494 = sbr.rel (%p492) target = $region20
        $region19: #{tpu_custom_call.1} parent=11 // pred_region
          _
        $region20: #{tpu_custom_call.1} parent=11 // pred_fallthru
          _
        // Predicated region
        $region21: #{tpu_custom_call.1} parent=11 // pred_check
          %p495 = pneg %p175
        $region22: #{tpu_custom_call.1} parent=11 // pred_check_branch
          %497 = sbr.rel (%p495) target = $region24
        $region23: #{tpu_custom_call.1} parent=11 // pred_region
          _
        $region24: #{tpu_custom_call.1} parent=11 // pred_fallthru
          _
        // Predicated region
        $region25: #{tpu_custom_call.1} parent=11 // pred_check
          %p498 = pneg %p196
        $region26: #{tpu_custom_call.1} parent=11 // pred_check_branch
          %500 = sbr.rel (%p498) target = $region28
        $region27: #{tpu_custom_call.1} parent=11 // pred_region
          _
        $region28: #{tpu_custom_call.1} parent=11 // pred_fallthru
          _
        // Predicated region
        $region29: #{tpu_custom_call.1} parent=11 // pred_check
          %p501 = pneg %p217
        $region30: #{tpu_custom_call.1} parent=11 // pred_check_branch
          %503 = sbr.rel (%p501) target = $region32
        $region31: #{tpu_custom_call.1} parent=11 // pred_region
          _
        $region32: #{tpu_custom_call.1} parent=11 // pred_fallthru
          _
        // Predicated region
        $region33: #{tpu_custom_call.1} parent=11 // pred_check
          %p504 = pneg %p238
        $region34: #{tpu_custom_call.1} parent=11 // pred_check_branch
          %506 = sbr.rel (%p504) target = $region36
        $region35: #{tpu_custom_call.1} parent=11 // pred_region
          _
        $region36: #{tpu_custom_call.1} parent=11 // pred_fallthru
          _
        // Predicated region
        $region37: #{tpu_custom_call.1} parent=11 // pred_check
          %p507 = pneg %p259
        $region38: #{tpu_custom_call.1} parent=11 // pred_check_branch
          %509 = sbr.rel (%p507) target = $region40
        $region39: #{tpu_custom_call.1} parent=11 // pred_region
          _
        $region40: #{tpu_custom_call.1} parent=11 // pred_fallthru
          _
        // Predicated region
        $region41: #{tpu_custom_call.1} parent=11 // pred_check
          %p510 = pneg %p280
        $region42: #{tpu_custom_call.1} parent=11 // pred_check_branch
          %512 = sbr.rel (%p510) target = $region44
        $region43: #{tpu_custom_call.1} parent=11 // pred_region
          _
        $region44: #{tpu_custom_call.1} parent=11 // pred_fallthru
          _
        // Predicated region
        $region45: #{tpu_custom_call.1} parent=11 // pred_check
          %p513 = pneg %p301
        $region46: #{tpu_custom_call.1} parent=11 // pred_check_branch
          %515 = sbr.rel (%p513) target = $region48
        $region47: #{tpu_custom_call.1} parent=11 // pred_region
          _
        $region48: #{tpu_custom_call.1} parent=11 // pred_fallthru
          _
        // Predicated region
        $region49: #{tpu_custom_call.1} parent=11 // pred_check
          %p516 = pneg %p322
        $region50: #{tpu_custom_call.1} parent=11 // pred_check_branch
          %518 = sbr.rel (%p516) target = $region52
        $region51: #{tpu_custom_call.1} parent=11 // pred_region
          _
        $region52: #{tpu_custom_call.1} parent=11 // pred_fallthru
          _
        // Predicated region
        $region53: #{tpu_custom_call.1} parent=11 // pred_check
          %p519 = pneg %p343
        $region54: #{tpu_custom_call.1} parent=11 // pred_check_branch
          %521 = sbr.rel (%p519) target = $region56
        $region55: #{tpu_custom_call.1} parent=11 // pred_region
          _
        $region56: #{tpu_custom_call.1} parent=11 // pred_fallthru
          _
        // Predicated region
        $region57: #{tpu_custom_call.1} parent=11 // pred_check
          %p522 = pneg %p364
        $region58: #{tpu_custom_call.1} parent=11 // pred_check_branch
          %524 = sbr.rel (%p522) target = $region60
        $region59: #{tpu_custom_call.1} parent=11 // pred_region
          _
        $region60: #{tpu_custom_call.1} parent=11 // pred_fallthru
          _
        // Predicated region
        $region61: #{tpu_custom_call.1} parent=11 // pred_check
          %p525 = pneg %p385
        $region62: #{tpu_custom_call.1} parent=11 // pred_check_branch
          %527 = sbr.rel (%p525) target = $region64
        $region63: #{tpu_custom_call.1} parent=11 // pred_region
          _
        $region64: #{tpu_custom_call.1} parent=11 // pred_fallthru
          _
        // Predicated region
        $region65: #{tpu_custom_call.1} parent=11 // pred_check
          %p528 = pneg %p406
        $region66: #{tpu_custom_call.1} parent=11 // pred_check_branch
          %530 = sbr.rel (%p528) target = $region68
        $region67: #{tpu_custom_call.1} parent=11 // pred_region
          _
        $region68: #{tpu_custom_call.1} parent=11 // pred_fallthru
          _
        // Predicated region
        $region69: #{tpu_custom_call.1} parent=11 // pred_check
          %p531 = pneg %p427
        $region70: #{tpu_custom_call.1} parent=11 // pred_check_branch
          %533 = sbr.rel (%p531) target = $region72
        $region71: #{tpu_custom_call.1} parent=11 // pred_region
          _
        $region72: #{tpu_custom_call.1} parent=11 // pred_fallthru
          _
        // Predicated region
        $region73: #{tpu_custom_call.1} parent=11 // pred_check
          %p534 = pneg %p448
        $region74: #{tpu_custom_call.1} parent=11 // pred_check_branch
          %536 = sbr.rel (%p534) target = $region76
        $region75: #{tpu_custom_call.1} parent=11 // pred_region
          _
        $region76: #{tpu_custom_call.1} parent=11 // pred_fallthru
          _
      $region12: #{tpu_custom_call.1} parent=5 // pred_fallthru
        _
      %p537 = scmp.lt.s32.totalorder %s34, 2
      // Predicated region
      $region77: #{tpu_custom_call.1} parent=5 // pred_check
        %p538 = pneg %p537
      $region78: #{tpu_custom_call.1} parent=5 // pred_check_branch
        %540 = sbr.rel (%p538) target = $region80
      $region79: #{tpu_custom_call.1} parent=5 // pred_region
        // Predicated region
        $region81: #{tpu_custom_call.1} parent=79 // pred_check
          %p541 = pneg %p54
        $region82: #{tpu_custom_call.1} parent=79 // pred_check_branch
          %543 = sbr.rel (%p541) target = $region84
        $region83: #{tpu_custom_call.1} parent=79 // pred_region
          %s544 = sand.u32 %s44, 1
          %s545 = scalar_lea.sflag [#allocation4], %s544
          %s546 = sand.u32 %s44, 1
          %s547 = smul.addr %s546, 4
          %s548 = scalar_lea.vmem [#allocation3], %s547
          %s550 = ssub.s32 64, 64
          %551 = vsyncadd %s545, %s550
          %s552 = smul.addr %s34, 64
          %s553 = scalar_lea.hbm %s0, %s552
          %s555 = sshll.u32 %s548, 4
          %s556 = int_to_ptr.vmem [resolvable:$true] %s555
          %558 = dma.hbm_to_vmem [thread:$0]  %s553, 64, %s556, %s545
        $region84: #{tpu_custom_call.1} parent=79 // pred_fallthru
          _
        // Predicated region
        $region85: #{tpu_custom_call.1} parent=79 // pred_check
          %p559 = pneg %p80
        $region86: #{tpu_custom_call.1} parent=79 // pred_check_branch
          %561 = sbr.rel (%p559) target = $region88
        $region87: #{tpu_custom_call.1} parent=79 // pred_region
          %s562 = sand.u32 %s34, 1
          %s563 = scalar_lea.sflag [#allocation7], %s562
          %s564 = sand.u32 %s70, 1
          %s565 = smul.addr %s564, 4
          %s566 = scalar_lea.vmem [#allocation6], %s565
          %s568 = ssub.s32 64, 64
          %569 = vsyncadd %s563, %s568
          %s570 = smul.addr %s34, 64
          %s571 = scalar_lea.hbm %s1, %s570
          %s573 = sshll.u32 %s566, 4
          %s574 = int_to_ptr.vmem [resolvable:$true] %s573
          %576 = dma.hbm_to_vmem [thread:$0]  %s571, 64, %s574, %s563
        $region88: #{tpu_custom_call.1} parent=79 // pred_fallthru
          _
        // Predicated region
        $region89: #{tpu_custom_call.1} parent=79 // pred_check
          %p577 = pneg %p106
        $region90: #{tpu_custom_call.1} parent=79 // pred_check_branch
          %579 = sbr.rel (%p577) target = $region92
        $region91: #{tpu_custom_call.1} parent=79 // pred_region
          %s580 = sand.u32 %s34, 1
          %s581 = scalar_lea.sflag [#allocation7], %s580
          %s582 = sand.u32 %s96, 1
          %s583 = smul.addr %s582, 4
          %s584 = scalar_lea.vmem [#allocation8], %s583
          %s586 = ssub.s32 64, 64
          %587 = vsyncadd %s581, %s586
          %s588 = smul.addr %s34, 64
          %s589 = scalar_lea.hbm %s2, %s588
          %s591 = sshll.u32 %s584, 4
          %s592 = int_to_ptr.vmem [resolvable:$true] %s591
          %594 = dma.hbm_to_vmem [thread:$0]  %s589, 64, %s592, %s581
        $region92: #{tpu_custom_call.1} parent=79 // pred_fallthru
          _
      $region80: #{tpu_custom_call.1} parent=5 // pred_fallthru
        _
      %p595 = scmp.le.s32.totalorder 1, %s34
      %p596 = scmp.lt.s32.totalorder %s34, 3
      %p597 = pnand %p595, %p596
      %p598 = pneg %p597
      // Predicated region
      $region93: #{tpu_custom_call.1} parent=5 // pred_check
        _
      $region94: #{tpu_custom_call.1} parent=5 // pred_check_branch
        %600 = sbr.rel (%p597) target = $region96
      $region95: #{tpu_custom_call.1} parent=5 // pred_region
        %s601 = ssub.s32 %s34, 1
        %s602 = sand.u32 %s47, 1
        %s603 = scalar_lea.sflag [#allocation4], %s602
        %s604 = sand.u32 %s47, 1
        %s605 = smul.addr %s604, 4
        %s606 = scalar_lea.vmem [#allocation3], %s605
        // Predicated region
        $region97: #{tpu_custom_call.1} parent=95 // pred_check
          %p607 = pneg %p60
        $region98: #{tpu_custom_call.1} parent=95 // pred_check_branch
          %609 = sbr.rel (%p607) target = $region100
        $region99: #{tpu_custom_call.1} parent=95 // pred_region
          %610 = dma.done %s603, 64
        $region100: #{tpu_custom_call.1} parent=95 // pred_fallthru
          _
        %s611 = sand.u32 %s39, 1
        %s612 = scalar_lea.sflag [#allocation7], %s611
        %s613 = sand.u32 %s73, 1
        %s614 = smul.addr %s613, 4
        %s615 = scalar_lea.vmem [#allocation6], %s614
        // Predicated region
        $region101: #{tpu_custom_call.1} parent=95 // pred_check
          %p616 = pneg %p86
        $region102: #{tpu_custom_call.1} parent=95 // pred_check_branch
          %618 = sbr.rel (%p616) target = $region104
        $region103: #{tpu_custom_call.1} parent=95 // pred_region
          %619 = dma.done %s612, 64
        $region104: #{tpu_custom_call.1} parent=95 // pred_fallthru
          _
        %s620 = sand.u32 %s39, 1
        %s621 = scalar_lea.sflag [#allocation7], %s620
        %s622 = sand.u32 %s99, 1
        %s623 = smul.addr %s622, 4
        %s624 = scalar_lea.vmem [#allocation8], %s623
        // Predicated region
        $region105: #{tpu_custom_call.1} parent=95 // pred_check
          %p625 = pneg %p112
        $region106: #{tpu_custom_call.1} parent=95 // pred_check_branch
          %627 = sbr.rel (%p625) target = $region108
        $region107: #{tpu_custom_call.1} parent=95 // pred_region
          %628 = dma.done %s621, 64
        $region108: #{tpu_custom_call.1} parent=95 // pred_fallthru
          _
        %s629 = sand.u32 %s47, 1
        %s630 = scalar_lea.sflag [#allocation4], %s629
        %s631 = sand.u32 %s47, 1
        %s632 = smul.addr %s631, 4
        %s633 = scalar_lea.vmem [#allocation3], %s632
        %p634 = pneg %p60
        %p635 = pneg %p57
        %s636 = sand.u32 %s39, 1
        %s637 = scalar_lea.sflag [#allocation7], %s636
        %s638 = sand.u32 %s73, 1
        %s639 = smul.addr %s638, 4
        %s640 = scalar_lea.vmem [#allocation6], %s639
        %p641 = pneg %p86
        %p642 = pneg %p83
        %s643 = sand.u32 %s39, 1
        %s644 = scalar_lea.sflag [#allocation7], %s643
        %s645 = sand.u32 %s99, 1
        %s646 = smul.addr %s645, 4
        %s647 = scalar_lea.vmem [#allocation8], %s646
        %p648 = pneg %p112
        %p649 = pneg %p109
        %p650 = pneg %p133
        %p651 = pneg %p130
        %p652 = pneg %p154
        %p653 = pneg %p151
        %p654 = pneg %p175
        %p655 = pneg %p172
        %p656 = pneg %p196
        %p657 = pneg %p193
        %p658 = pneg %p217
        %p659 = pneg %p214
        %p660 = pneg %p238
        %p661 = pneg %p235
        %p662 = pneg %p259
        %p663 = pneg %p256
        %p664 = pneg %p280
        %p665 = pneg %p277
        %p666 = pneg %p301
        %p667 = pneg %p298
        %p668 = pneg %p322
        %p669 = pneg %p319
        %p670 = pneg %p343
        %p671 = pneg %p340
        %p672 = pneg %p364
        %p673 = pneg %p361
        %p674 = pneg %p385
        %p675 = pneg %p382
        %p676 = pneg %p406
        %p677 = pneg %p403
        %p678 = pneg %p427
        %p679 = pneg %p424
        %p680 = pneg %p448
        %p681 = pneg %p445
        %p682 = pneg %p474
        %p683 = pneg %p471
        %s684 = sand.u32 %s461, 1
        %s685 = scalar_lea.sflag [#allocation5], %s684
        %s686 = sand.u32 %s461, 1
        %s687 = smul.addr %s686, 4
        %s688 = scalar_lea.vmem [#allocation9], %s687
        %v690 = vld [vmem:[%s606] sm:$0xf]
        %v691 = vld [vmem:[%s615] sm:$0xf]
        %v692 = vld [vmem:[%s624] sm:$0xf]
        %v693 = vunpack.c.l.bf16 %v690
        %v694 = vld [vmem:[%s3] sm:$0xf]
        %v695 = vld [vmem:[%s3 + $0x4] sm:$0xf]
        %v696 = vld [vmem:[%s3 + $0x8] sm:$0xf]
        %v697 = vld [vmem:[%s3 + $0xc] sm:$0xf]
        %v698 = vld [vmem:[%s4] sm:$0x1]
        %v700 = vlaneseq
        %v701 = vshrl.u32 %v700, 7
        %v702 = vsub.s32 0, %v701
        %v703 = vrot.slane %v698, %v702
        %v709 = vunpack.c.l.b16 %v694
        %v710 = vunpack.c.l.b16 %v695
        %v711 = vunpack.c.l.b16 %v696
        %v712 = vunpack.c.l.b16 %v697
        %v713 = vpack.c.b16 %v710, %v709
        %v714 = vpack.c.b16 %v712, %v711
        %vm717 = vcmask 261120
        %v719 = vsel %vm717, %v690, 0
        %721 = vmatprep.subr.bf16.mxu0 0
        %722 = vmatpush1.bf16.msra.mxu0 0
        %723 = vmatprep.subr.bf16.mxu0 0
        %724 = vmatpush1.bf16.msra.mxu0 0
        %725 = vmatprep.subr.bf16.mxu0 0
        %726 = vmatpush1.bf16.msra.mxu0 0
        %727 = vmatprep.subr.bf16.mxu0 0
        %728 = vmatpush1.bf16.msra.mxu0 0
        %729 = vmatprep.subr.bf16.mxu0 0
        %730 = vmatpush1.bf16.msra.mxu0 0
        %731 = vmatprep.subr.bf16.mxu0 0
        %732 = vmatpush1.bf16.msra.mxu0 0
        %733 = vmatprep.subr.bf16.mxu0 0
        %734 = vmatpush1.bf16.msra.mxu0 %v714
        %735 = vmatprep.subr.bf16.mxu0 0
        %736 = vmatpush1.bf16.msra.mxu0 %v713
        %737 = vmatprep.subr.bf16.mxu0 0
        %738 = vmatpush2.bf16.msra.mxu0 0
        %739 = vmatprep.subr.bf16.mxu0 0
        %740 = vmatpush2.bf16.msra.mxu0 0
        %741 = vmatprep.subr.bf16.mxu0 0
        %742 = vmatpush2.bf16.msra.mxu0 0
        %743 = vmatprep.subr.bf16.mxu0 0
        %744 = vmatpush2.bf16.msra.mxu0 0
        %745 = vmatprep.subr.bf16.mxu0 0
        %746 = vmatpush2.bf16.msra.mxu0 0
        %747 = vmatprep.subr.bf16.mxu0 0
        %748 = vmatpush2.bf16.msra.mxu0 0
        %749 = vmatprep.subr.bf16.mxu0 0
        %750 = vmatpush2.bf16.msra.mxu0 0
        %751 = vmatprep.subr.bf16.mxu0 0
        %752 = vmatpush2.bf16.msra.mxu0 0
        %753 = vmatprep.mubr.bf16.mxu0 0
        %754 = vmatmul.mubr.bf16.gmra.mxu0 %v719
        %v755 = vpop.f32.mrf.mxu0
        %v756 = vadd.f32 %v703, %v755
        %v757 = vpop.f32.mrf.mxu0
        %v758 = vpop.f32.mrf.mxu0
        %v759 = vpop.f32.mrf.mxu0
        %760 = vdwg.mxu0
        %v761 = vpack.c.bf16 %v756, %v756
        %v762 = vld [vmem:[%s5] sm:$0xf]
        %v763 = vld [vmem:[%s5 + $0x4] sm:$0xf]
        %v764 = vld [vmem:[%s5 + $0x8] sm:$0xf]
        %v765 = vld [vmem:[%s5 + $0xc] sm:$0xf]
        %v766 = vld [vmem:[%s6] sm:$0x1]
        %v768 = vlaneseq
        %v769 = vshrl.u32 %v768, 7
        %v770 = vsub.s32 0, %v769
        %v771 = vrot.slane %v766, %v770
        %v777 = vunpack.c.l.b16 %v762
        %v778 = vunpack.c.l.b16 %v763
        %v779 = vunpack.c.l.b16 %v764
        %v780 = vunpack.c.l.b16 %v765
        %v781 = vpack.c.b16 %v778, %v777
        %v782 = vpack.c.b16 %v780, %v779
        %v786 = vsel %vm717, %v691, 0
        %788 = vmatprep.subr.bf16.mxu0 0
        %789 = vmatpush1.bf16.msra.mxu0 0
        %790 = vmatprep.subr.bf16.mxu0 0
        %791 = vmatpush1.bf16.msra.mxu0 0
        %792 = vmatprep.subr.bf16.mxu0 0
        %793 = vmatpush1.bf16.msra.mxu0 0
        %794 = vmatprep.subr.bf16.mxu0 0
        %795 = vmatpush1.bf16.msra.mxu0 0
        %796 = vmatprep.subr.bf16.mxu0 0
        %797 = vmatpush1.bf16.msra.mxu0 0
        %798 = vmatprep.subr.bf16.mxu0 0
        %799 = vmatpush1.bf16.msra.mxu0 0
        %800 = vmatprep.subr.bf16.mxu0 0
        %801 = vmatpush1.bf16.msra.mxu0 %v782
        %802 = vmatprep.subr.bf16.mxu0 0
        %803 = vmatpush1.bf16.msra.mxu0 %v781
        %804 = vmatprep.subr.bf16.mxu0 0
        %805 = vmatpush2.bf16.msra.mxu0 0
        %806 = vmatprep.subr.bf16.mxu0 0
        %807 = vmatpush2.bf16.msra.mxu0 0
        %808 = vmatprep.subr.bf16.mxu0 0
        %809 = vmatpush2.bf16.msra.mxu0 0
        %810 = vmatprep.subr.bf16.mxu0 0
        %811 = vmatpush2.bf16.msra.mxu0 0
        %812 = vmatprep.subr.bf16.mxu0 0
        %813 = vmatpush2.bf16.msra.mxu0 0
        %814 = vmatprep.subr.bf16.mxu0 0
        %815 = vmatpush2.bf16.msra.mxu0 0
        %816 = vmatprep.subr.bf16.mxu0 0
        %817 = vmatpush2.bf16.msra.mxu0 0
        %818 = vmatprep.subr.bf16.mxu0 0
        %819 = vmatpush2.bf16.msra.mxu0 0
        %820 = vmatprep.mubr.bf16.mxu0 0
        %821 = vmatmul.mubr.bf16.gmra.mxu0 %v786
        %v822 = vpop.f32.mrf.mxu0
        %v823 = vadd.f32 %v771, %v822
        %v824 = vpop.f32.mrf.mxu0
        %v825 = vpop.f32.mrf.mxu0
        %v826 = vpop.f32.mrf.mxu0
        %827 = vdwg.mxu0
        %v828 = vpack.c.bf16 %v823, %v823
        %v829 = vld [vmem:[%s7] sm:$0xf]
        %v830 = vld [vmem:[%s7 + $0x4] sm:$0xf]
        %v831 = vld [vmem:[%s7 + $0x8] sm:$0xf]
        %v832 = vld [vmem:[%s7 + $0xc] sm:$0xf]
        %v833 = vld [vmem:[%s8] sm:$0x1]
        %v835 = vlaneseq
        %v836 = vshrl.u32 %v835, 7
        %v837 = vsub.s32 0, %v836
        %v838 = vrot.slane %v833, %v837
        %v844 = vunpack.c.l.b16 %v829
        %v845 = vunpack.c.l.b16 %v830
        %v846 = vunpack.c.l.b16 %v831
        %v847 = vunpack.c.l.b16 %v832
        %v848 = vpack.c.b16 %v845, %v844
        %v849 = vpack.c.b16 %v847, %v846
        %v853 = vsel %vm717, %v692, 0
        %855 = vmatprep.subr.bf16.mxu0 0
        %856 = vmatpush1.bf16.msra.mxu0 0
        %857 = vmatprep.subr.bf16.mxu0 0
        %858 = vmatpush1.bf16.msra.mxu0 0
        %859 = vmatprep.subr.bf16.mxu0 0
        %860 = vmatpush1.bf16.msra.mxu0 0
        %861 = vmatprep.subr.bf16.mxu0 0
        %862 = vmatpush1.bf16.msra.mxu0 0
        %863 = vmatprep.subr.bf16.mxu0 0
        %864 = vmatpush1.bf16.msra.mxu0 0
        %865 = vmatprep.subr.bf16.mxu0 0
        %866 = vmatpush1.bf16.msra.mxu0 0
        %867 = vmatprep.subr.bf16.mxu0 0
        %868 = vmatpush1.bf16.msra.mxu0 %v849
        %869 = vmatprep.subr.bf16.mxu0 0
        %870 = vmatpush1.bf16.msra.mxu0 %v848
        %871 = vmatprep.subr.bf16.mxu0 0
        %872 = vmatpush2.bf16.msra.mxu0 0
        %873 = vmatprep.subr.bf16.mxu0 0
        %874 = vmatpush2.bf16.msra.mxu0 0
        %875 = vmatprep.subr.bf16.mxu0 0
        %876 = vmatpush2.bf16.msra.mxu0 0
        %877 = vmatprep.subr.bf16.mxu0 0
        %878 = vmatpush2.bf16.msra.mxu0 0
        %879 = vmatprep.subr.bf16.mxu0 0
        %880 = vmatpush2.bf16.msra.mxu0 0
        %881 = vmatprep.subr.bf16.mxu0 0
        %882 = vmatpush2.bf16.msra.mxu0 0
        %883 = vmatprep.subr.bf16.mxu0 0
        %884 = vmatpush2.bf16.msra.mxu0 0
        %885 = vmatprep.subr.bf16.mxu0 0
        %886 = vmatpush2.bf16.msra.mxu0 0
        %887 = vmatprep.mubr.bf16.mxu0 0
        %888 = vmatmul.mubr.bf16.gmra.mxu0 %v853
        %v889 = vpop.f32.mrf.mxu0
        %v890 = vadd.f32 %v838, %v889
        %v891 = vpop.f32.mrf.mxu0
        %v892 = vpop.f32.mrf.mxu0
        %v893 = vpop.f32.mrf.mxu0
        %894 = vdwg.mxu0
        %v895 = vpack.c.bf16 %v890, %v890
        %vm896 = vcmask 64512
        %v898 = vsel %vm896, %v761, 0
        %v901 = vsel %vm896, %v828, 0
        %903 = vmatprep.subr.bf16.mxu0 0
        %904 = vmatpush1.bf16.xpose.msra.mxu0 0
        %905 = vmatprep.subr.bf16.mxu0 0
        %906 = vmatpush1.bf16.xpose.msra.mxu0 0
        %907 = vmatprep.subr.bf16.mxu0 0
        %908 = vmatpush1.bf16.xpose.msra.mxu0 0
        %909 = vmatprep.subr.bf16.mxu0 0
        %910 = vmatpush1.bf16.xpose.msra.mxu0 0
        %911 = vmatprep.subr.bf16.mxu0 0
        %912 = vmatpush1.bf16.xpose.msra.mxu0 0
        %913 = vmatprep.subr.bf16.mxu0 0
        %914 = vmatpush1.bf16.xpose.msra.mxu0 0
        %915 = vmatprep.subr.bf16.mxu0 0
        %916 = vmatpush1.bf16.xpose.msra.mxu0 0
        %917 = vmatprep.subr.bf16.mxu0 0
        %918 = vmatpush1.bf16.xpose.msra.mxu0 %v901
        %919 = vmatprep.subr.bf16.mxu0 0
        %920 = vmatpush2.bf16.xpose.msra.mxu0 0
        %921 = vmatprep.subr.bf16.mxu0 0
        %922 = vmatpush2.bf16.xpose.msra.mxu0 0
        %923 = vmatprep.subr.bf16.mxu0 0
        %924 = vmatpush2.bf16.xpose.msra.mxu0 0
        %925 = vmatprep.subr.bf16.mxu0 0
        %926 = vmatpush2.bf16.xpose.msra.mxu0 0
        %927 = vmatprep.subr.bf16.mxu0 0
        %928 = vmatpush2.bf16.xpose.msra.mxu0 0
        %929 = vmatprep.subr.bf16.mxu0 0
        %930 = vmatpush2.bf16.xpose.msra.mxu0 0
        %931 = vmatprep.subr.bf16.mxu0 0
        %932 = vmatpush2.bf16.xpose.msra.mxu0 0
        %933 = vmatprep.subr.bf16.mxu0 0
        %934 = vmatpush2.bf16.xpose.msra.mxu0 0
        %935 = vmatprep.mubr.bf16.mxu0 0
        %936 = vmatmul.mubr.bf16.gmra.mxu0 %v898
        %v937 = vpop.f32.mrf.mxu0
        %v938 = vadd.f32 0.0, %v937
        %v939 = vpop.f32.mrf.mxu0
        %v940 = vpop.f32.mrf.mxu0
        %v941 = vpop.f32.mrf.mxu0
        %942 = vdwg.mxu0
        %v943 = vsel %vm896, %v938, -inf
        %944 = vmax.xlane.f32.xlu0 %v943
        %v945 = vpop.xlane.xlu0 %944
        %v946 = vsub.f32 %v938, %v945
        %v947 = vmul.f32 %v946, 1.442695
        %v948 = vpow.pop %v947
        %v949 = vsel %vm896, %v948, 0.0
        %950 = vadd.xlane.f32.xlu0 %v949
        %v951 = vpop.xlane.xlu0 %950
        %v952 = vrcp.pop %v951
        %v953 = vmul.f32 %v948, %v952
        %v954 = vpack.c.bf16 %v953, %v953
        %v956 = vsel %vm896, %v954, 0
        %vm958 = vcmask 1043456
        %v960 = vsel %vm958, %v895, 0
        %962 = vmatprep.subr.bf16.mxu0 0
        %963 = vmatpush1.bf16.msra.mxu0 0
        %964 = vmatprep.subr.bf16.mxu0 0
        %965 = vmatpush1.bf16.msra.mxu0 0
        %966 = vmatprep.subr.bf16.mxu0 0
        %967 = vmatpush1.bf16.msra.mxu0 0
        %968 = vmatprep.subr.bf16.mxu0 0
        %969 = vmatpush1.bf16.msra.mxu0 0
        %970 = vmatprep.subr.bf16.mxu0 0
        %971 = vmatpush1.bf16.msra.mxu0 0
        %972 = vmatprep.subr.bf16.mxu0 0
        %973 = vmatpush1.bf16.msra.mxu0 0
        %974 = vmatprep.subr.bf16.mxu0 0
        %975 = vmatpush1.bf16.msra.mxu0 0
        %976 = vmatprep.subr.bf16.mxu0 0
        %977 = vmatpush1.bf16.msra.mxu0 %v960
        %978 = vmatprep.subr.bf16.mxu0 0
        %979 = vmatpush2.bf16.msra.mxu0 0
        %980 = vmatprep.subr.bf16.mxu0 0
        %981 = vmatpush2.bf16.msra.mxu0 0
        %982 = vmatprep.subr.bf16.mxu0 0
        %983 = vmatpush2.bf16.msra.mxu0 0
        %984 = vmatprep.subr.bf16.mxu0 0
        %985 = vmatpush2.bf16.msra.mxu0 0
        %986 = vmatprep.subr.bf16.mxu0 0
        %987 = vmatpush2.bf16.msra.mxu0 0
        %988 = vmatprep.subr.bf16.mxu0 0
        %989 = vmatpush2.bf16.msra.mxu0 0
        %990 = vmatprep.subr.bf16.mxu0 0
        %991 = vmatpush2.bf16.msra.mxu0 0
        %992 = vmatprep.subr.bf16.mxu0 0
        %993 = vmatpush2.bf16.msra.mxu0 0
        %994 = vmatprep.mubr.bf16.mxu0 0
        %995 = vmatmul.mubr.bf16.gmra.mxu0 %v956
        %v996 = vpop.f32.mrf.mxu0
        %v997 = vadd.f32 0.0, %v996
        %v998 = vpop.f32.mrf.mxu0
        %v999 = vpop.f32.mrf.mxu0
        %v1000 = vpop.f32.mrf.mxu0
        %1001 = vdwg.mxu0
        %v1002 = vpack.c.bf16 %v997, %v997
        %vm1003 = vcmask 60416
        %1004 = vst.msk [vmem:[#allocation2] sm:$0xf] %vm1003, %v1002
        %1006 = vrot.lane.b32.xlu0 %v761, 120
        %v1007 = vpop.permute.xlu0 %1006
        %1009 = vrot.lane.b32.xlu0 %v828, 120
        %v1010 = vpop.permute.xlu0 %1009
        %v1012 = vsel %vm896, %v1007, 0
        %v1015 = vsel %vm896, %v1010, 0
        %1017 = vmatprep.subr.bf16.mxu0 0
        %1018 = vmatpush1.bf16.xpose.msra.mxu0 0
        %1019 = vmatprep.subr.bf16.mxu0 0
        %1020 = vmatpush1.bf16.xpose.msra.mxu0 0
        %1021 = vmatprep.subr.bf16.mxu0 0
        %1022 = vmatpush1.bf16.xpose.msra.mxu0 0
        %1023 = vmatprep.subr.bf16.mxu0 0
        %1024 = vmatpush1.bf16.xpose.msra.mxu0 0
        %1025 = vmatprep.subr.bf16.mxu0 0
        %1026 = vmatpush1.bf16.xpose.msra.mxu0 0
        %1027 = vmatprep.subr.bf16.mxu0 0
        %1028 = vmatpush1.bf16.xpose.msra.mxu0 0
        %1029 = vmatprep.subr.bf16.mxu0 0
        %1030 = vmatpush1.bf16.xpose.msra.mxu0 0
        %1031 = vmatprep.subr.bf16.mxu0 0
        %1032 = vmatpush1.bf16.xpose.msra.mxu0 %v1015
        %1033 = vmatprep.subr.bf16.mxu0 0
        %1034 = vmatpush2.bf16.xpose.msra.mxu0 0
        %1035 = vmatprep.subr.bf16.mxu0 0
        %1036 = vmatpush2.bf16.xpose.msra.mxu0 0
        %1037 = vmatprep.subr.bf16.mxu0 0
        %1038 = vmatpush2.bf16.xpose.msra.mxu0 0
        %1039 = vmatprep.subr.bf16.mxu0 0
        %1040 = vmatpush2.bf16.xpose.msra.mxu0 0
        %1041 = vmatprep.subr.bf16.mxu0 0
        %1042 = vmatpush2.bf16.xpose.msra.mxu0 0
        %1043 = vmatprep.subr.bf16.mxu0 0
        %1044 = vmatpush2.bf16.xpose.msra.mxu0 0
        %1045 = vmatprep.subr.bf16.mxu0 0
        %1046 = vmatpush2.bf16.xpose.msra.mxu0 0
        %1047 = vmatprep.subr.bf16.mxu0 0
        %1048 = vmatpush2.bf16.xpose.msra.mxu0 0
        %1049 = vmatprep.mubr.bf16.mxu0 0
        %1050 = vmatmul.mubr.bf16.gmra.mxu0 %v1012
        %v1051 = vpop.f32.mrf.mxu0
        %v1052 = vadd.f32 0.0, %v1051
        %v1053 = vpop.f32.mrf.mxu0
        %v1054 = vpop.f32.mrf.mxu0
        %v1055 = vpop.f32.mrf.mxu0
        %1056 = vdwg.mxu0
        %v1057 = vsel %vm896, %v1052, -inf
        %1058 = vmax.xlane.f32.xlu0 %v1057
        %v1059 = vpop.xlane.xlu0 %1058
        %v1060 = vsub.f32 %v1052, %v1059
        %v1061 = vmul.f32 %v1060, 1.442695
        %v1062 = vpow.pop %v1061
        %v1063 = vsel %vm896, %v1062, 0.0
        %1064 = vadd.xlane.f32.xlu0 %v1063
        %v1065 = vpop.xlane.xlu0 %1064
        %v1066 = vrcp.pop %v1065
        %v1067 = vmul.f32 %v1062, %v1066
        %v1068 = vpack.c.bf16 %v1067, %v1067
        %1070 = vrot.lane.b32.xlu0 %v895, 120
        %v1071 = vpop.permute.xlu0 %1070
        %v1073 = vsel %vm896, %v1068, 0
        %v1076 = vsel %vm958, %v1071, 0
        %1078 = vmatprep.subr.bf16.mxu0 0
        %1079 = vmatpush1.bf16.msra.mxu0 0
        %1080 = vmatprep.subr.bf16.mxu0 0
        %1081 = vmatpush1.bf16.msra.mxu0 0
        %1082 = vmatprep.subr.bf16.mxu0 0
        %1083 = vmatpush1.bf16.msra.mxu0 0
        %1084 = vmatprep.subr.bf16.mxu0 0
        %1085 = vmatpush1.bf16.msra.mxu0 0
        %1086 = vmatprep.subr.bf16.mxu0 0
        %1087 = vmatpush1.bf16.msra.mxu0 0
        %1088 = vmatprep.subr.bf16.mxu0 0
        %1089 = vmatpush1.bf16.msra.mxu0 0
        %1090 = vmatprep.subr.bf16.mxu0 0
        %1091 = vmatpush1.bf16.msra.mxu0 0
        %1092 = vmatprep.subr.bf16.mxu0 0
        %1093 = vmatpush1.bf16.msra.mxu0 %v1076
        %1094 = vmatprep.subr.bf16.mxu0 0
        %1095 = vmatpush2.bf16.msra.mxu0 0
        %1096 = vmatprep.subr.bf16.mxu0 0
        %1097 = vmatpush2.bf16.msra.mxu0 0
        %1098 = vmatprep.subr.bf16.mxu0 0
        %1099 = vmatpush2.bf16.msra.mxu0 0
        %1100 = vmatprep.subr.bf16.mxu0 0
        %1101 = vmatpush2.bf16.msra.mxu0 0
        %1102 = vmatprep.subr.bf16.mxu0 0
        %1103 = vmatpush2.bf16.msra.mxu0 0
        %1104 = vmatprep.subr.bf16.mxu0 0
        %1105 = vmatpush2.bf16.msra.mxu0 0
        %1106 = vmatprep.subr.bf16.mxu0 0
        %1107 = vmatpush2.bf16.msra.mxu0 0
        %1108 = vmatprep.subr.bf16.mxu0 0
        %1109 = vmatpush2.bf16.msra.mxu0 0
        %1110 = vmatprep.mubr.bf16.mxu0 0
        %1111 = vmatmul.mubr.bf16.gmra.mxu0 %v1073
        %v1112 = vpop.f32.mrf.mxu0
        %v1113 = vadd.f32 0.0, %v1112
        %v1114 = vpop.f32.mrf.mxu0
        %v1115 = vpop.f32.mrf.mxu0
        %v1116 = vpop.f32.mrf.mxu0
        %1117 = vdwg.mxu0
        %v1118 = vpack.c.bf16 %v1113, %v1113
        %v1120 = vunpack.c.l.b16 %v1118
        %v1121 = vpack.c.b16 %v1120, %v1120
        %1122 = vrot.lane.b32.xlu0 %v1121, 8
        %v1123 = vpop.permute.xlu0 %1122
        %vm1125 = vcmask 126016
        %1126 = vst.msk [vmem:[#allocation2] sm:$0xf] %vm1125, %v1123
        %1127 = vrot.lane.b32.xlu0 %v761, 112
        %v1128 = vpop.permute.xlu0 %1127
        %1129 = vrot.lane.b32.xlu0 %v828, 112
        %v1130 = vpop.permute.xlu0 %1129
        %v1132 = vsel %vm896, %v1128, 0
        %v1135 = vsel %vm896, %v1130, 0
        %1137 = vmatprep.subr.bf16.mxu0 0
        %1138 = vmatpush1.bf16.xpose.msra.mxu0 0
        %1139 = vmatprep.subr.bf16.mxu0 0
        %1140 = vmatpush1.bf16.xpose.msra.mxu0 0
        %1141 = vmatprep.subr.bf16.mxu0 0
        %1142 = vmatpush1.bf16.xpose.msra.mxu0 0
        %1143 = vmatprep.subr.bf16.mxu0 0
        %1144 = vmatpush1.bf16.xpose.msra.mxu0 0
        %1145 = vmatprep.subr.bf16.mxu0 0
        %1146 = vmatpush1.bf16.xpose.msra.mxu0 0
        %1147 = vmatprep.subr.bf16.mxu0 0
        %1148 = vmatpush1.bf16.xpose.msra.mxu0 0
        %1149 = vmatprep.subr.bf16.mxu0 0
        %1150 = vmatpush1.bf16.xpose.msra.mxu0 0
        %1151 = vmatprep.subr.bf16.mxu0 0
        %1152 = vmatpush1.bf16.xpose.msra.mxu0 %v1135
        %1153 = vmatprep.subr.bf16.mxu0 0
        %1154 = vmatpush2.bf16.xpose.msra.mxu0 0
        %1155 = vmatprep.subr.bf16.mxu0 0
        %1156 = vmatpush2.bf16.xpose.msra.mxu0 0
        %1157 = vmatprep.subr.bf16.mxu0 0
        %1158 = vmatpush2.bf16.xpose.msra.mxu0 0
        %1159 = vmatprep.subr.bf16.mxu0 0
        %1160 = vmatpush2.bf16.xpose.msra.mxu0 0
        %1161 = vmatprep.subr.bf16.mxu0 0
        %1162 = vmatpush2.bf16.xpose.msra.mxu0 0
        %1163 = vmatprep.subr.bf16.mxu0 0
        %1164 = vmatpush2.bf16.xpose.msra.mxu0 0
        %1165 = vmatprep.subr.bf16.mxu0 0
        %1166 = vmatpush2.bf16.xpose.msra.mxu0 0
        %1167 = vmatprep.subr.bf16.mxu0 0
        %1168 = vmatpush2.bf16.xpose.msra.mxu0 0
        %1169 = vmatprep.mubr.bf16.mxu0 0
        %1170 = vmatmul.mubr.bf16.gmra.mxu0 %v1132
        %v1171 = vpop.f32.mrf.mxu0
        %v1172 = vadd.f32 0.0, %v1171
        %v1173 = vpop.f32.mrf.mxu0
        %v1174 = vpop.f32.mrf.mxu0
        %v1175 = vpop.f32.mrf.mxu0
        %1176 = vdwg.mxu0
        %v1177 = vsel %vm896, %v1172, -inf
        %1178 = vmax.xlane.f32.xlu0 %v1177
        %v1179 = vpop.xlane.xlu0 %1178
        %v1180 = vsub.f32 %v1172, %v1179
        %v1181 = vmul.f32 %v1180, 1.442695
        %v1182 = vpow.pop %v1181
        %v1183 = vsel %vm896, %v1182, 0.0
        %1184 = vadd.xlane.f32.xlu0 %v1183
        %v1185 = vpop.xlane.xlu0 %1184
        %v1186 = vrcp.pop %v1185
        %v1187 = vmul.f32 %v1182, %v1186
        %v1188 = vpack.c.bf16 %v1187, %v1187
        %1189 = vrot.lane.b32.xlu0 %v895, 112
        %v1190 = vpop.permute.xlu0 %1189
        %v1192 = vsel %vm896, %v1188, 0
        %v1195 = vsel %vm958, %v1190, 0
        %1197 = vmatprep.subr.bf16.mxu0 0
        %1198 = vmatpush1.bf16.msra.mxu0 0
        %1199 = vmatprep.subr.bf16.mxu0 0
        %1200 = vmatpush1.bf16.msra.mxu0 0
        %1201 = vmatprep.subr.bf16.mxu0 0
        %1202 = vmatpush1.bf16.msra.mxu0 0
        %1203 = vmatprep.subr.bf16.mxu0 0
        %1204 = vmatpush1.bf16.msra.mxu0 0
        %1205 = vmatprep.subr.bf16.mxu0 0
        %1206 = vmatpush1.bf16.msra.mxu0 0
        %1207 = vmatprep.subr.bf16.mxu0 0
        %1208 = vmatpush1.bf16.msra.mxu0 0
        %1209 = vmatprep.subr.bf16.mxu0 0
        %1210 = vmatpush1.bf16.msra.mxu0 0
        %1211 = vmatprep.subr.bf16.mxu0 0
        %1212 = vmatpush1.bf16.msra.mxu0 %v1195
        %1213 = vmatprep.subr.bf16.mxu0 0
        %1214 = vmatpush2.bf16.msra.mxu0 0
        %1215 = vmatprep.subr.bf16.mxu0 0
        %1216 = vmatpush2.bf16.msra.mxu0 0
        %1217 = vmatprep.subr.bf16.mxu0 0
        %1218 = vmatpush2.bf16.msra.mxu0 0
        %1219 = vmatprep.subr.bf16.mxu0 0
        %1220 = vmatpush2.bf16.msra.mxu0 0
        %1221 = vmatprep.subr.bf16.mxu0 0
        %1222 = vmatpush2.bf16.msra.mxu0 0
        %1223 = vmatprep.subr.bf16.mxu0 0
        %1224 = vmatpush2.bf16.msra.mxu0 0
        %1225 = vmatprep.subr.bf16.mxu0 0
        %1226 = vmatpush2.bf16.msra.mxu0 0
        %1227 = vmatprep.subr.bf16.mxu0 0
        %1228 = vmatpush2.bf16.msra.mxu0 0
        %1229 = vmatprep.mubr.bf16.mxu0 0
        %1230 = vmatmul.mubr.bf16.gmra.mxu0 %v1192
        %v1231 = vpop.f32.mrf.mxu0
        %v1232 = vadd.f32 0.0, %v1231
        %v1233 = vpop.f32.mrf.mxu0
        %v1234 = vpop.f32.mrf.mxu0
        %v1235 = vpop.f32.mrf.mxu0
        %1236 = vdwg.mxu0
        %v1237 = vpack.c.bf16 %v1232, %v1232
        %v1239 = vunpack.c.l.b16 %v1237
        %v1240 = vpack.c.b16 %v1239, %v1239
        %1241 = vrot.lane.b32.xlu0 %v1240, 16
        %v1242 = vpop.permute.xlu0 %1241
        %vm1244 = vcmask 191616
        %1245 = vst.msk [vmem:[#allocation2] sm:$0xf] %vm1244, %v1242
        %1246 = vrot.lane.b32.xlu0 %v761, 104
        %v1247 = vpop.permute.xlu0 %1246
        %1248 = vrot.lane.b32.xlu0 %v828, 104
        %v1249 = vpop.permute.xlu0 %1248
        %v1251 = vsel %vm896, %v1247, 0
        %v1254 = vsel %vm896, %v1249, 0
        %1256 = vmatprep.subr.bf16.mxu0 0
        %1257 = vmatpush1.bf16.xpose.msra.mxu0 0
        %1258 = vmatprep.subr.bf16.mxu0 0
        %1259 = vmatpush1.bf16.xpose.msra.mxu0 0
        %1260 = vmatprep.subr.bf16.mxu0 0
        %1261 = vmatpush1.bf16.xpose.msra.mxu0 0
        %1262 = vmatprep.subr.bf16.mxu0 0
        %1263 = vmatpush1.bf16.xpose.msra.mxu0 0
        %1264 = vmatprep.subr.bf16.mxu0 0
        %1265 = vmatpush1.bf16.xpose.msra.mxu0 0
        %1266 = vmatprep.subr.bf16.mxu0 0
        %1267 = vmatpush1.bf16.xpose.msra.mxu0 0
        %1268 = vmatprep.subr.bf16.mxu0 0
        %1269 = vmatpush1.bf16.xpose.msra.mxu0 0
        %1270 = vmatprep.subr.bf16.mxu0 0
        %1271 = vmatpush1.bf16.xpose.msra.mxu0 %v1254
        %1272 = vmatprep.subr.bf16.mxu0 0
        %1273 = vmatpush2.bf16.xpose.msra.mxu0 0
        %1274 = vmatprep.subr.bf16.mxu0 0
        %1275 = vmatpush2.bf16.xpose.msra.mxu0 0
        %1276 = vmatprep.subr.bf16.mxu0 0
        %1277 = vmatpush2.bf16.xpose.msra.mxu0 0
        %1278 = vmatprep.subr.bf16.mxu0 0
        %1279 = vmatpush2.bf16.xpose.msra.mxu0 0
        %1280 = vmatprep.subr.bf16.mxu0 0
        %1281 = vmatpush2.bf16.xpose.msra.mxu0 0
        %1282 = vmatprep.subr.bf16.mxu0 0
        %1283 = vmatpush2.bf16.xpose.msra.mxu0 0
        %1284 = vmatprep.subr.bf16.mxu0 0
        %1285 = vmatpush2.bf16.xpose.msra.mxu0 0
        %1286 = vmatprep.subr.bf16.mxu0 0
        %1287 = vmatpush2.bf16.xpose.msra.mxu0 0
        %1288 = vmatprep.mubr.bf16.mxu0 0
        %1289 = vmatmul.mubr.bf16.gmra.mxu0 %v1251
        %v1290 = vpop.f32.mrf.mxu0
        %v1291 = vadd.f32 0.0, %v1290
        %v1292 = vpop.f32.mrf.mxu0
        %v1293 = vpop.f32.mrf.mxu0
        %v1294 = vpop.f32.mrf.mxu0
        %1295 = vdwg.mxu0
        %v1296 = vsel %vm896, %v1291, -inf
        %1297 = vmax.xlane.f32.xlu0 %v1296
        %v1298 = vpop.xlane.xlu0 %1297
        %v1299 = vsub.f32 %v1291, %v1298
        %v1300 = vmul.f32 %v1299, 1.442695
        %v1301 = vpow.pop %v1300
        %v1302 = vsel %vm896, %v1301, 0.0
        %1303 = vadd.xlane.f32.xlu0 %v1302
        %v1304 = vpop.xlane.xlu0 %1303
        %v1305 = vrcp.pop %v1304
        %v1306 = vmul.f32 %v1301, %v1305
        %v1307 = vpack.c.bf16 %v1306, %v1306
        %1308 = vrot.lane.b32.xlu0 %v895, 104
        %v1309 = vpop.permute.xlu0 %1308
        %v1311 = vsel %vm896, %v1307, 0
        %v1314 = vsel %vm958, %v1309, 0
        %1316 = vmatprep.subr.bf16.mxu0 0
        %1317 = vmatpush1.bf16.msra.mxu0 0
        %1318 = vmatprep.subr.bf16.mxu0 0
        %1319 = vmatpush1.bf16.msra.mxu0 0
        %1320 = vmatprep.subr.bf16.mxu0 0
        %1321 = vmatpush1.bf16.msra.mxu0 0
        %1322 = vmatprep.subr.bf16.mxu0 0
        %1323 = vmatpush1.bf16.msra.mxu0 0
        %1324 = vmatprep.subr.bf16.mxu0 0
        %1325 = vmatpush1.bf16.msra.mxu0 0
        %1326 = vmatprep.subr.bf16.mxu0 0
        %1327 = vmatpush1.bf16.msra.mxu0 0
        %1328 = vmatprep.subr.bf16.mxu0 0
        %1329 = vmatpush1.bf16.msra.mxu0 0
        %1330 = vmatprep.subr.bf16.mxu0 0
        %1331 = vmatpush1.bf16.msra.mxu0 %v1314
        %1332 = vmatprep.subr.bf16.mxu0 0
        %1333 = vmatpush2.bf16.msra.mxu0 0
        %1334 = vmatprep.subr.bf16.mxu0 0
        %1335 = vmatpush2.bf16.msra.mxu0 0
        %1336 = vmatprep.subr.bf16.mxu0 0
        %1337 = vmatpush2.bf16.msra.mxu0 0
        %1338 = vmatprep.subr.bf16.mxu0 0
        %1339 = vmatpush2.bf16.msra.mxu0 0
        %1340 = vmatprep.subr.bf16.mxu0 0
        %1341 = vmatpush2.bf16.msra.mxu0 0
        %1342 = vmatprep.subr.bf16.mxu0 0
        %1343 = vmatpush2.bf16.msra.mxu0 0
        %1344 = vmatprep.subr.bf16.mxu0 0
        %1345 = vmatpush2.bf16.msra.mxu0 0
        %1346 = vmatprep.subr.bf16.mxu0 0
        %1347 = vmatpush2.bf16.msra.mxu0 0
        %1348 = vmatprep.mubr.bf16.mxu0 0
        %1349 = vmatmul.mubr.bf16.gmra.mxu0 %v1311
        %v1350 = vpop.f32.mrf.mxu0
        %v1351 = vadd.f32 0.0, %v1350
        %v1352 = vpop.f32.mrf.mxu0
        %v1353 = vpop.f32.mrf.mxu0
        %v1354 = vpop.f32.mrf.mxu0
        %1355 = vdwg.mxu0
        %v1356 = vpack.c.bf16 %v1351, %v1351
        %v1358 = vunpack.c.l.b16 %v1356
        %v1359 = vpack.c.b16 %v1358, %v1358
        %1360 = vrot.lane.b32.xlu0 %v1359, 24
        %v1361 = vpop.permute.xlu0 %1360
        %vm1363 = vcmask 257216
        %1364 = vst.msk [vmem:[#allocation2] sm:$0xf] %vm1363, %v1361
        %v1365 = vld [vmem:[#allocation2] sm:$0xf]
        %v1366 = vld [vmem:[%s9] sm:$0xf]
        %v1367 = vld [vmem:[%s9 + $0x4] sm:$0xf]
        %v1368 = vld [vmem:[%s9 + $0x8] sm:$0xf]
        %v1369 = vld [vmem:[%s9 + $0xc] sm:$0xf]
        %v1370 = vld [vmem:[%s10] sm:$0x1]
        %v1372 = vlaneseq
        %v1373 = vshrl.u32 %v1372, 7
        %v1374 = vsub.s32 0, %v1373
        %v1375 = vrot.slane %v1370, %v1374
        %v1381 = vunpack.c.l.b16 %v1366
        %v1382 = vunpack.c.l.b16 %v1367
        %v1383 = vunpack.c.l.b16 %v1368
        %v1384 = vunpack.c.l.b16 %v1369
        %v1385 = vpack.c.b16 %v1382, %v1381
        %v1386 = vpack.c.b16 %v1384, %v1383
        %v1390 = vsel %vm717, %v1365, 0
        %1392 = vmatprep.subr.bf16.mxu0 0
        %1393 = vmatpush1.bf16.msra.mxu0 0
        %1394 = vmatprep.subr.bf16.mxu0 0
        %1395 = vmatpush1.bf16.msra.mxu0 0
        %1396 = vmatprep.subr.bf16.mxu0 0
        %1397 = vmatpush1.bf16.msra.mxu0 0
        %1398 = vmatprep.subr.bf16.mxu0 0
        %1399 = vmatpush1.bf16.msra.mxu0 0
        %1400 = vmatprep.subr.bf16.mxu0 0
        %1401 = vmatpush1.bf16.msra.mxu0 0
        %1402 = vmatprep.subr.bf16.mxu0 0
        %1403 = vmatpush1.bf16.msra.mxu0 0
        %1404 = vmatprep.subr.bf16.mxu0 0
        %1405 = vmatpush1.bf16.msra.mxu0 %v1386
        %1406 = vmatprep.subr.bf16.mxu0 0
        %1407 = vmatpush1.bf16.msra.mxu0 %v1385
        %1408 = vmatprep.subr.bf16.mxu0 0
        %1409 = vmatpush2.bf16.msra.mxu0 0
        %1410 = vmatprep.subr.bf16.mxu0 0
        %1411 = vmatpush2.bf16.msra.mxu0 0
        %1412 = vmatprep.subr.bf16.mxu0 0
        %1413 = vmatpush2.bf16.msra.mxu0 0
        %1414 = vmatprep.subr.bf16.mxu0 0
        %1415 = vmatpush2.bf16.msra.mxu0 0
        %1416 = vmatprep.subr.bf16.mxu0 0
        %1417 = vmatpush2.bf16.msra.mxu0 0
        %1418 = vmatprep.subr.bf16.mxu0 0
        %1419 = vmatpush2.bf16.msra.mxu0 0
        %1420 = vmatprep.subr.bf16.mxu0 0
        %1421 = vmatpush2.bf16.msra.mxu0 0
        %1422 = vmatprep.subr.bf16.mxu0 0
        %1423 = vmatpush2.bf16.msra.mxu0 0
        %1424 = vmatprep.mubr.bf16.mxu0 0
        %1425 = vmatmul.mubr.bf16.gmra.mxu0 %v1390
        %v1426 = vpop.f32.mrf.mxu0
        %v1427 = vadd.f32 %v1375, %v1426
        %v1428 = vpop.f32.mrf.mxu0
        %v1429 = vpop.f32.mrf.mxu0
        %v1430 = vpop.f32.mrf.mxu0
        %1431 = vdwg.mxu0
        %v1432 = vadd.f32 %v1427, %v693
        %v1433 = vld [vmem:[%s11] sm:$0x1]
        %v1434 = vld [vmem:[%s12] sm:$0x1]
        %v1435 = vsel %vm717, %v1432, 0.0
        %1436 = vadd.xlane.f32.xlu0 %v1435
        %v1437 = vpop.xlane.xlu0 %1436
        %v1438 = vrcp.pop 32.0
        %v1439 = vmul.f32 %v1437, %v1438
        %v1440 = vsub.f32 %v1432, %v1439
        %v1441 = vmul.f32 %v1440, %v1440
        %v1442 = vsel %vm717, %v1441, 0.0
        %1443 = vadd.xlane.f32.xlu0 %v1442
        %v1444 = vpop.xlane.xlu0 %1443
        %v1445 = vmul.f32 %v1444, %v1438
        %v1446 = vadd.f32 %v1445, 1e-05
        %v1447 = vrsqrt.pop %v1446
        %v1448 = vmul.f32 %v1440, %v1447
        %v1450 = vlaneseq
        %v1451 = vshrl.u32 %v1450, 7
        %v1452 = vsub.s32 0, %v1451
        %v1453 = vrot.slane %v1433, %v1452
        %v1455 = vmul.f32 %v1448, %v1453
        %v1457 = vlaneseq
        %v1458 = vshrl.u32 %v1457, 7
        %v1459 = vsub.s32 0, %v1458
        %v1460 = vrot.slane %v1434, %v1459
        %v1462 = vadd.f32 %v1455, %v1460
        %v1463 = vpack.c.bf16 %v1462, %v1462
        %v1464 = vld [vmem:[%s13] sm:$0xf]
        %v1465 = vld [vmem:[%s13 + $0x4] sm:$0xf]
        %v1466 = vld [vmem:[%s13 + $0x8] sm:$0xf]
        %v1467 = vld [vmem:[%s13 + $0xc] sm:$0xf]
        %v1468 = vld [vmem:[%s14] sm:$0x1]
        %v1470 = vlaneseq
        %v1471 = vshrl.u32 %v1470, 7
        %v1472 = vsub.s32 0, %v1471
        %v1473 = vrot.slane %v1468, %v1472
        %v1479 = vunpack.c.l.b16 %v1464
        %v1480 = vunpack.c.l.b16 %v1465
        %v1481 = vunpack.c.l.b16 %v1466
        %v1482 = vunpack.c.l.b16 %v1467
        %v1483 = vpack.c.b16 %v1480, %v1479
        %v1484 = vpack.c.b16 %v1482, %v1481
        %v1488 = vsel %vm717, %v1463, 0
        %1490 = vmatprep.subr.bf16.mxu0 0
        %1491 = vmatpush1.bf16.msra.mxu0 0
        %1492 = vmatprep.subr.bf16.mxu0 0
        %1493 = vmatpush1.bf16.msra.mxu0 0
        %1494 = vmatprep.subr.bf16.mxu0 0
        %1495 = vmatpush1.bf16.msra.mxu0 0
        %1496 = vmatprep.subr.bf16.mxu0 0
        %1497 = vmatpush1.bf16.msra.mxu0 0
        %1498 = vmatprep.subr.bf16.mxu0 0
        %1499 = vmatpush1.bf16.msra.mxu0 0
        %1500 = vmatprep.subr.bf16.mxu0 0
        %1501 = vmatpush1.bf16.msra.mxu0 0
        %1502 = vmatprep.subr.bf16.mxu0 0
        %1503 = vmatpush1.bf16.msra.mxu0 %v1484
        %1504 = vmatprep.subr.bf16.mxu0 0
        %1505 = vmatpush1.bf16.msra.mxu0 %v1483
        %1506 = vmatprep.subr.bf16.mxu0 0
        %1507 = vmatpush2.bf16.msra.mxu0 0
        %1508 = vmatprep.subr.bf16.mxu0 0
        %1509 = vmatpush2.bf16.msra.mxu0 0
        %1510 = vmatprep.subr.bf16.mxu0 0
        %1511 = vmatpush2.bf16.msra.mxu0 0
        %1512 = vmatprep.subr.bf16.mxu0 0
        %1513 = vmatpush2.bf16.msra.mxu0 0
        %1514 = vmatprep.subr.bf16.mxu0 0
        %1515 = vmatpush2.bf16.msra.mxu0 0
        %1516 = vmatprep.subr.bf16.mxu0 0
        %1517 = vmatpush2.bf16.msra.mxu0 0
        %1518 = vmatprep.subr.bf16.mxu0 0
        %1519 = vmatpush2.bf16.msra.mxu0 0
        %1520 = vmatprep.subr.bf16.mxu0 0
        %1521 = vmatpush2.bf16.msra.mxu0 0
        %1522 = vmatprep.mubr.bf16.mxu0 0
        %1523 = vmatmul.mubr.bf16.gmra.mxu0 %v1488
        %v1524 = vpop.f32.mrf.mxu0
        %v1525 = vadd.f32 %v1473, %v1524
        %v1526 = vpop.f32.mrf.mxu0
        %v1527 = vpop.f32.mrf.mxu0
        %v1528 = vpop.f32.mrf.mxu0
        %1529 = vdwg.mxu0
        %v1530 = vxor.u32 %v1525, 2147483648
        %v1531 = vmul.f32 %v1530, 1.442695
        %v1532 = vpow.pop %v1531
        %v1533 = vadd.f32 %v1532, 1.0
        %v1534 = vrcp.pop %v1533
        %v1535 = vmul.f32 1.0, %v1534
        %v1536 = vmul.f32 %v1525, %v1535
        %v1537 = vpack.c.bf16 %v1536, %v1536
        %v1538 = vld [vmem:[%s15] sm:$0xf]
        %v1539 = vld [vmem:[%s15 + $0x4] sm:$0xf]
        %v1540 = vld [vmem:[%s15 + $0x8] sm:$0xf]
        %v1541 = vld [vmem:[%s15 + $0xc] sm:$0xf]
        %v1542 = vld [vmem:[%s15 + $0x10] sm:$0xf]
        %v1543 = vld [vmem:[%s15 + $0x14] sm:$0xf]
        %v1544 = vld [vmem:[%s15 + $0x18] sm:$0xf]
        %v1545 = vld [vmem:[%s15 + $0x1c] sm:$0xf]
        %v1546 = vld [vmem:[%s15 + $0x20] sm:$0xf]
        %v1547 = vld [vmem:[%s15 + $0x24] sm:$0xf]
        %v1548 = vld [vmem:[%s15 + $0x28] sm:$0xf]
        %v1549 = vld [vmem:[%s15 + $0x2c] sm:$0xf]
        %v1550 = vld [vmem:[%s15 + $0x30] sm:$0xf]
        %v1551 = vld [vmem:[%s15 + $0x34] sm:$0xf]
        %v1552 = vld [vmem:[%s15 + $0x38] sm:$0xf]
        %v1553 = vld [vmem:[%s15 + $0x3c] sm:$0xf]
        %v1554 = vld [vmem:[%s16] sm:$0x1]
        %v1556 = vlaneseq
        %v1557 = vshrl.u32 %v1556, 7
        %v1558 = vsub.s32 0, %v1557
        %v1559 = vrot.slane %v1554, %v1558
        %v1577 = vunpack.c.l.b16 %v1538
        %v1578 = vunpack.c.l.b16 %v1539
        %v1579 = vunpack.c.l.b16 %v1540
        %v1580 = vunpack.c.l.b16 %v1541
        %v1581 = vunpack.c.l.b16 %v1542
        %v1582 = vunpack.c.l.b16 %v1543
        %v1583 = vunpack.c.l.b16 %v1544
        %v1584 = vunpack.c.l.b16 %v1545
        %v1585 = vunpack.c.l.b16 %v1546
        %v1586 = vunpack.c.l.b16 %v1547
        %v1587 = vunpack.c.l.b16 %v1548
        %v1588 = vunpack.c.l.b16 %v1549
        %v1589 = vunpack.c.l.b16 %v1550
        %v1590 = vunpack.c.l.b16 %v1551
        %v1591 = vunpack.c.l.b16 %v1552
        %v1592 = vunpack.c.l.b16 %v1553
        %v1593 = vpack.c.b16 %v1578, %v1577
        %v1594 = vpack.c.b16 %v1580, %v1579
        %v1595 = vpack.c.b16 %v1582, %v1581
        %v1596 = vpack.c.b16 %v1584, %v1583
        %v1597 = vpack.c.b16 %v1586, %v1585
        %v1598 = vpack.c.b16 %v1588, %v1587
        %v1599 = vpack.c.b16 %v1590, %v1589
        %v1600 = vpack.c.b16 %v1592, %v1591
        %1609 = vmatprep.subr.bf16.mxu0 0
        %1610 = vmatpush1.bf16.msra.mxu0 %v1600
        %1611 = vmatprep.subr.bf16.mxu0 0
        %1612 = vmatpush1.bf16.msra.mxu0 %v1599
        %1613 = vmatprep.subr.bf16.mxu0 0
        %1614 = vmatpush1.bf16.msra.mxu0 %v1598
        %1615 = vmatprep.subr.bf16.mxu0 0
        %1616 = vmatpush1.bf16.msra.mxu0 %v1597
        %1617 = vmatprep.subr.bf16.mxu0 0
        %1618 = vmatpush1.bf16.msra.mxu0 %v1596
        %1619 = vmatprep.subr.bf16.mxu0 0
        %1620 = vmatpush1.bf16.msra.mxu0 %v1595
        %1621 = vmatprep.subr.bf16.mxu0 0
        %1622 = vmatpush1.bf16.msra.mxu0 %v1594
        %1623 = vmatprep.subr.bf16.mxu0 0
        %1624 = vmatpush1.bf16.msra.mxu0 %v1593
        %1625 = vmatprep.subr.bf16.mxu0 0
        %1626 = vmatpush2.bf16.msra.mxu0 0
        %1627 = vmatprep.subr.bf16.mxu0 0
        %1628 = vmatpush2.bf16.msra.mxu0 0
        %1629 = vmatprep.subr.bf16.mxu0 0
        %1630 = vmatpush2.bf16.msra.mxu0 0
        %1631 = vmatprep.subr.bf16.mxu0 0
        %1632 = vmatpush2.bf16.msra.mxu0 0
        %1633 = vmatprep.subr.bf16.mxu0 0
        %1634 = vmatpush2.bf16.msra.mxu0 0
        %1635 = vmatprep.subr.bf16.mxu0 0
        %1636 = vmatpush2.bf16.msra.mxu0 0
        %1637 = vmatprep.subr.bf16.mxu0 0
        %1638 = vmatpush2.bf16.msra.mxu0 0
        %1639 = vmatprep.subr.bf16.mxu0 0
        %1640 = vmatpush2.bf16.msra.mxu0 0
        %1641 = vmatprep.mubr.bf16.mxu0 0
        %1642 = vmatmul.mubr.bf16.gmra.mxu0 %v1537
        %v1643 = vpop.f32.mrf.mxu0
        %v1644 = vadd.f32 %v1559, %v1643
        %v1645 = vpop.f32.mrf.mxu0
        %v1646 = vpop.f32.mrf.mxu0
        %v1647 = vpop.f32.mrf.mxu0
        %1648 = vdwg.mxu0
        %v1649 = vadd.f32 %v1644, %v1462
        %v1650 = vld [vmem:[%s17] sm:$0x1]
        %v1651 = vld [vmem:[%s18] sm:$0x1]
        %v1652 = vsel %vm717, %v1649, 0.0
        %1653 = vadd.xlane.f32.xlu0 %v1652
        %v1654 = vpop.xlane.xlu0 %1653
        %v1655 = vmul.f32 %v1654, %v1438
        %v1656 = vsub.f32 %v1649, %v1655
        %v1657 = vmul.f32 %v1656, %v1656
        %v1658 = vsel %vm717, %v1657, 0.0
        %1659 = vadd.xlane.f32.xlu0 %v1658
        %v1660 = vpop.xlane.xlu0 %1659
        %v1661 = vmul.f32 %v1660, %v1438
        %v1662 = vadd.f32 %v1661, 1e-05
        %v1663 = vrsqrt.pop %v1662
        %v1664 = vmul.f32 %v1656, %v1663
        %v1666 = vlaneseq
        %v1667 = vshrl.u32 %v1666, 7
        %v1668 = vsub.s32 0, %v1667
        %v1669 = vrot.slane %v1650, %v1668
        %v1671 = vmul.f32 %v1664, %v1669
        %v1673 = vlaneseq
        %v1674 = vshrl.u32 %v1673, 7
        %v1675 = vsub.s32 0, %v1674
        %v1676 = vrot.slane %v1651, %v1675
        %v1678 = vadd.f32 %v1671, %v1676
        %v1679 = vpack.c.bf16 %v1678, %v1678
        %vm1680 = vcmask 257024
        %1681 = vst.msk [vmem:[%s688] sm:$0xf] %vm1680, %v1679
        %s1682 = sand.u32 %s461, 1
        %s1683 = scalar_lea.sflag [#allocation5], %s1682
        %s1684 = sand.u32 %s461, 1
        %s1685 = smul.addr %s1684, 4
        %s1686 = scalar_lea.vmem [#allocation9], %s1685
        // Predicated region
        $region109: #{tpu_custom_call.1} parent=95 // pred_check
          %p1687 = pneg %p471
        $region110: #{tpu_custom_call.1} parent=95 // pred_check_branch
          %1689 = sbr.rel (%p1687) target = $region112
        $region111: #{tpu_custom_call.1} parent=95 // pred_region
          %s1691 = ssub.s32 64, 64
          %1692 = vsyncadd %s1683, %s1691
          %s1693 = smul.addr %s39, 64
          %s1694 = scalar_lea.hbm %s19, %s1693
          %s1696 = sshll.u32 %s1686, 4
          %s1697 = int_to_ptr.vmem [resolvable:$true] %s1696
          %1699 = dma.vmem_to_hbm [thread:$0]  %s1697, 64, %s1694, %s1683
        $region112: #{tpu_custom_call.1} parent=95 // pred_fallthru
          _
      $region96: #{tpu_custom_call.1} parent=5 // pred_fallthru
        _
      %p1700 = scmp.le.s32.totalorder 2, %s34
      // Predicated region
      $region113: #{tpu_custom_call.1} parent=5 // pred_check
        %p1701 = pneg %p1700
      $region114: #{tpu_custom_call.1} parent=5 // pred_check_branch
        %1703 = sbr.rel (%p1701) target = $region116
      $region115: #{tpu_custom_call.1} parent=5 // pred_region
        %s1704 = ssub.s32 %s34, 2
        // Predicated region
        $region117: #{tpu_custom_call.1} parent=115 // pred_check
          %p1705 = pneg %p477
        $region118: #{tpu_custom_call.1} parent=115 // pred_check_branch
          %1707 = sbr.rel (%p1705) target = $region120
        $region119: #{tpu_custom_call.1} parent=115 // pred_region
          %s1708 = sand.u32 %s462, 1
          %s1709 = scalar_lea.sflag [#allocation5], %s1708
          %s1710 = sand.u32 %s462, 1
          %s1711 = smul.addr %s1710, 4
          %s1712 = scalar_lea.vmem [#allocation9], %s1711
          %1713 = dma.done %s1709, 64
        $region120: #{tpu_custom_call.1} parent=115 // pred_fallthru
          _
      $region116: #{tpu_custom_call.1} parent=5 // pred_fallthru
        _
    $region6: #{tpu_custom_call.1} parent=1 // loop_footer
      %s38 = sadd.s32 1, %s34
    $region7: #{tpu_custom_call.1} parent=1 // loop_footer_branch
      %33 = sbr.rel target = $region3
    $region8: #{tpu_custom_call.1} parent=1 // loop_exit
      _
    %1714 = vsyncpa [#allocation4], 1
    %s1715 = scalar_lea.sflag [#allocation4], 1
    %1716 = vsyncpa %s1715, 1
    %1717 = vsyncpa [#allocation7], 1
    %s1718 = scalar_lea.sflag [#allocation7], 1
    %1719 = vsyncpa %s1718, 1
    %1720 = vsyncpa [#allocation5], 1
    %s1721 = scalar_lea.sflag [#allocation5], 1
    %1722 = vsyncpa %s1721, 1

</llo_original>
